<compile_context>
chip_gen: v6e
topology: v6e:2x2x1
jax: 0.10.0
libtpu: 0.0.40
codegen_flags: <defaults>
</compile_context>

<pallas_src>
import functools

import jax
import jax.numpy as jnp
import numpy as np
from jax.experimental import pallas as pl
from jax.experimental.pallas import tpu as pltpu

LANE = 128  # TPU lane width: hidden/output feature dims are padded to this.


def _round_up(x, m):
    return (x + m - 1) // m * m


def _choose_tile_n(n):
    # Largest tile in {1024, 512, 256} that still leaves >= 4 grid steps
    # (>= 2 parallel steps feed both v7x TensorCores, and the pipeline stays
    # more than one tile deep); tiny inputs fall back to a single 8-aligned tile.
    for t in (1024, 512, 256):
        if n >= 4 * t:
            return t
    return min(256, _round_up(n, 8))


def _mlp_kernel(x_ref, w0_ref, b0_ref, *refs, num_hidden, out_features,
                mxu_dtype):
    """Fused forward for one N-tile.

    Arg layout:
      x_ref  : (tile_n, d_in)        f32 (UNPADDED feature dim)
      w0_ref : (d_in, hidden_pad)    f32 (layer 0 stays f32, VPU path)
      b0_ref : (1, hidden_pad)       f32
      refs   : (w1, b1, ..., w_last, b_last, o_ref)
               w_i : (in_pad, out_pad) bf16, already transposed (h @ w)
               b_i : (1, out_pad)      f32
      o_ref  : (tile_n, out_features) f32 (UNPADDED output)
    """
    o_ref = refs[-1]
    params = refs[:-1]

    # ---- Layer 0: full f32 on the VPU. d_in is tiny (e.g. 3 coordinates),
    #      so an unrolled loop of broadcast multiply-adds beats a K=3 MXU pass
    #      and keeps the raw inputs in f32.  (Assumes small d_in.)
    x = x_ref[...]                               # (tile_n, d_in) f32
    w0 = w0_ref[...]                             # (d_in, hidden_pad) f32
    h = b0_ref[...] + x[:, 0:1] * w0[0:1, :]     # (tile_n, hidden_pad) f32
    for k in range(1, x.shape[1]):
        h = h + x[:, k:k + 1] * w0[k:k + 1, :]
    h = jnp.maximum(h, 0.0)

    # ---- Hidden / output layers: bf16 MXU matmuls, f32 accumulation.
    #      Weights are already bf16 (pre-cast in prepare_params): no per-step
    #      f32->bf16 casts here.
    def linear(h, w_ref, b_ref):
        return jnp.dot(h.astype(mxu_dtype), w_ref[...],
                       preferred_element_type=jnp.float32) + b_ref[...]

    idx = 0
    for _ in range(num_hidden):
        h = jnp.maximum(linear(h, params[idx], params[idx + 1]), 0.0)
        idx += 2

    # ---- Output layer + sigmoid; keep / store only the real columns.
    z = linear(h, params[idx], params[idx + 1])[:, :out_features]
    y = pl.reciprocal(1.0 + jnp.exp(-z), approx=True)   # EUP, not a VALU divide
    o_ref[...] = y.astype(o_ref.dtype)


def prepare_params(weights, biases, *, mxu_dtype=jnp.bfloat16):
    """One-time param prep, hoisted out of the per-call hot path.

    Layer 0 : weight kept f32, transposed, shape (d_in, hidden_pad)
              (the kernel runs it on the VPU in full f32; d_in stays unpadded).
    Others  : transposed, both dims padded to 128, pre-cast to bf16.
    Biases  : f32, shape (1, out_pad).
    """
    prepared = []
    for i, (w, b) in enumerate(zip(weights, biases)):
        out_f, in_f = w.shape
        out_p = _round_up(out_f, LANE)
        in_p = in_f if i == 0 else _round_up(in_f, LANE)
        w_dtype = jnp.float32 if i == 0 else mxu_dtype
        wt = jnp.zeros((in_p, out_p), jnp.float32).at[:in_f, :out_f].set(w.T)
        wt = wt.astype(w_dtype)
        bp = jnp.zeros((1, out_p), jnp.float32).at[0, :out_f].set(b)
        prepared.append((wt, bp))
    return prepared


def relu_mlp_forward(x, prepared, *, out_features=3, tile_n=None,
                     mxu_dtype=jnp.bfloat16):
    """Fused ReLU_model forward.  x: (N, dim_in) float32, UNPADDED."""
    n, d_in = x.shape
    assert prepared[0][0].shape[0] == d_in, "first-layer weight/dim_in mismatch"
    num_hidden = len(prepared) - 2

    if tile_n is None:
        tile_n = _choose_tile_n(n)
    n_p = _round_up(n, tile_n)
    x_p = x if n_p == n else jnp.pad(x, ((0, n_p - n), (0, 0)))

    kernel = functools.partial(_mlp_kernel, num_hidden=num_hidden,
                               out_features=out_features, mxu_dtype=mxu_dtype)

    # Resident (non-tiled) specs for every weight / bias: constant block index,
    # so they are fetched once and stay in VMEM across all grid steps.
    param_specs, flat_params = [], []
    for wt, bp in prepared:
        param_specs.append(pl.BlockSpec(wt.shape, lambda i: (0, 0)))
        param_specs.append(pl.BlockSpec(bp.shape, lambda i: (0, 0)))
        flat_params.extend([wt, bp])

    out = pl.pallas_call(
        kernel,
        out_shape=jax.ShapeDtypeStruct((n_p, out_features), x.dtype),
        grid_spec=pltpu.PrefetchScalarGridSpec(
            num_scalar_prefetch=0,
            grid=(n_p // tile_n,),
            in_specs=[pl.BlockSpec((tile_n, d_in), lambda i: (i, 0))]
            + param_specs,
            out_specs=pl.BlockSpec((tile_n, out_features), lambda i: (i, 0)),
        ),
        compiler_params=pltpu.CompilerParams(
            dimension_semantics=("parallel",),   # shard N-tiles across TCs (v7x)
            vmem_limit_bytes=32 * 1024 * 1024,   # safe on v5e/v6e/v7x
        ),
    )(x_p, *flat_params)

    return out if n_p == n else out[:n]


def _reference(x, weights, biases, hidden_dtype):
    """Pure-JAX reference: layer 0 in f32 (matches the kernel's VPU path),
    remaining layers with `hidden_dtype` operands and f32 accumulation."""
    h = x
    last = len(weights) - 1
    for i, (w, b) in enumerate(zip(weights, biases)):
        if i == 0:
            z = jnp.dot(h, w.T, precision=jax.lax.Precision.HIGHEST) + b
        else:
            z = jnp.dot(h.astype(hidden_dtype), w.T.astype(hidden_dtype),
                        preferred_element_type=jnp.float32) + b
        h = (1.0 / (1.0 + jnp.exp(-z))) if i == last else jnp.maximum(z, 0.0)
    return h


def init_params(key, dim_in, hidden_size, hidden_layers, out_features=3):
    """Deterministic params matching nn.Linear's default uniform init."""
    dims = [dim_in] + [hidden_size] * (hidden_layers + 1) + [out_features]
    weights, biases = [], []
    for in_f, out_f in zip(dims[:-1], dims[1:]):
        key, kw, kb = jax.random.split(key, 3)
        bound = 1.0 / np.sqrt(in_f)
        weights.append(
            jax.random.uniform(kw, (out_f, in_f), jnp.float32, -bound, bound)
        )
        biases.append(
            jax.random.uniform(kb, (out_f,), jnp.float32, -bound, bound)
        )
    return weights, biases


if __name__ == "__main__":
    key = jax.random.PRNGKey(0)
    kx, kp = jax.random.split(key)

    # Coordinate-style input, small MLP, consistent with the module.
    N, DIM_IN, HIDDEN, HIDDEN_LAYERS = 1024, 3, 32, 2

    x = jax.random.normal(kx, (N, DIM_IN), jnp.float32)
    weights, biases = init_params(kp, DIM_IN, HIDDEN, HIDDEN_LAYERS)

    prepared = prepare_params(weights, biases)   # hoisted out of the hot path
    y = relu_mlp_forward(x, prepared, out_features=3)
    y = jax.block_until_ready(y)
    assert y.shape == (N, 3)

    # Check vs. a reference using matching operand dtypes (f32 layer 0,
    # bf16 hidden/output layers); tolerance covers accumulation order and the
    # approximate EUP reciprocal in the sigmoid.
    ref_mixed = _reference(x, weights, biases, jnp.bfloat16)
    np.testing.assert_allclose(np.asarray(y), np.asarray(ref_mixed),
                               rtol=1e-2, atol=1e-2)

    # Looser sanity check vs. the full-f32 (PyTorch-equivalent) forward.
    ref_f32 = _reference(x, weights, biases, jnp.float32)
    np.testing.assert_allclose(np.asarray(y), np.asarray(ref_f32),
                               rtol=3e-2, atol=3e-2)

    print("KERNEL_OK")
</pallas_src>

<mosaic_0001>
module attributes {stable_mosaic.version = 11 : i64} {
  func.func @_mlp_kernel(%arg0: i32, %arg1: memref<256x3xf32, #tpu.memory_space<vmem>>, %arg2: memref<3x128xf32, #tpu.memory_space<vmem>>, %arg3: memref<1x128xf32, #tpu.memory_space<vmem>>, %arg4: memref<128x128xbf16, #tpu.memory_space<vmem>>, %arg5: memref<1x128xf32, #tpu.memory_space<vmem>>, %arg6: memref<128x128xbf16, #tpu.memory_space<vmem>>, %arg7: memref<1x128xf32, #tpu.memory_space<vmem>>, %arg8: memref<128x128xbf16, #tpu.memory_space<vmem>>, %arg9: memref<1x128xf32, #tpu.memory_space<vmem>>, %arg10: memref<256x3xf32, #tpu.memory_space<vmem>>) attributes {dimension_semantics = [#tpu.dimension_semantics<parallel>], iteration_bounds = array<i64: 4>, scalar_prefetch = 0 : i64, scratch_operands = 0 : i64, tpu.core_type = #tpu.core_type<tc>, window_params = [{transform_indices = @transform_0, window_bounds = array<i64: 256, 3>}, {pipeline_mode = #tpu.pipeline_mode<synchronous>, transform_indices = @transform_1, window_bounds = array<i64: 3, 128>}, {pipeline_mode = #tpu.pipeline_mode<synchronous>, transform_indices = @transform_2, window_bounds = array<i64: 1, 128>}, {pipeline_mode = #tpu.pipeline_mode<synchronous>, transform_indices = @transform_3, window_bounds = array<i64: 128, 128>}, {pipeline_mode = #tpu.pipeline_mode<synchronous>, transform_indices = @transform_4, window_bounds = array<i64: 1, 128>}, {pipeline_mode = #tpu.pipeline_mode<synchronous>, transform_indices = @transform_5, window_bounds = array<i64: 128, 128>}, {pipeline_mode = #tpu.pipeline_mode<synchronous>, transform_indices = @transform_6, window_bounds = array<i64: 1, 128>}, {pipeline_mode = #tpu.pipeline_mode<synchronous>, transform_indices = @transform_7, window_bounds = array<i64: 128, 128>}, {pipeline_mode = #tpu.pipeline_mode<synchronous>, transform_indices = @transform_8, window_bounds = array<i64: 1, 128>}, {transform_indices = @transform_9, window_bounds = array<i64: 256, 3>}]} {
    %c0 = arith.constant 0 : index
    %c0_0 = arith.constant 0 : index
    %0 = vector.load %arg1[%c0, %c0_0] : memref<256x3xf32, #tpu.memory_space<vmem>>, vector<256x3xf32>
    %c0_1 = arith.constant 0 : index
    %c0_2 = arith.constant 0 : index
    %1 = vector.load %arg2[%c0_1, %c0_2] : memref<3x128xf32, #tpu.memory_space<vmem>>, vector<3x128xf32>
    %c0_3 = arith.constant 0 : index
    %c0_4 = arith.constant 0 : index
    %2 = vector.load %arg3[%c0_3, %c0_4] : memref<1x128xf32, #tpu.memory_space<vmem>>, vector<1x128xf32>
    %3 = vector.extract_strided_slice %0 {offsets = [0, 0], sizes = [256, 1], strides = [1, 1]} : vector<256x3xf32> to vector<256x1xf32>
    %4 = vector.extract_strided_slice %1 {offsets = [0, 0], sizes = [1, 128], strides = [1, 1]} : vector<3x128xf32> to vector<1x128xf32>
    %5 = vector.broadcast %3 : vector<256x1xf32> to vector<256x128xf32>
    %6 = vector.broadcast %4 : vector<1x128xf32> to vector<256x128xf32>
    %7 = arith.mulf %5, %6 : vector<256x128xf32>
    %8 = vector.broadcast %2 : vector<1x128xf32> to vector<256x128xf32>
    %9 = arith.addf %8, %7 : vector<256x128xf32>
    %10 = vector.extract_strided_slice %0 {offsets = [0, 1], sizes = [256, 1], strides = [1, 1]} : vector<256x3xf32> to vector<256x1xf32>
    %11 = vector.extract_strided_slice %1 {offsets = [1, 0], sizes = [1, 128], strides = [1, 1]} : vector<3x128xf32> to vector<1x128xf32>
    %12 = vector.broadcast %10 : vector<256x1xf32> to vector<256x128xf32>
    %13 = vector.broadcast %11 : vector<1x128xf32> to vector<256x128xf32>
    %14 = arith.mulf %12, %13 : vector<256x128xf32>
    %15 = arith.addf %9, %14 : vector<256x128xf32>
    %16 = vector.extract_strided_slice %0 {offsets = [0, 2], sizes = [256, 1], strides = [1, 1]} : vector<256x3xf32> to vector<256x1xf32>
    %17 = vector.extract_strided_slice %1 {offsets = [2, 0], sizes = [1, 128], strides = [1, 1]} : vector<3x128xf32> to vector<1x128xf32>
    %18 = vector.broadcast %16 : vector<256x1xf32> to vector<256x128xf32>
    %19 = vector.broadcast %17 : vector<1x128xf32> to vector<256x128xf32>
    %20 = arith.mulf %18, %19 : vector<256x128xf32>
    %21 = arith.addf %15, %20 : vector<256x128xf32>
    %cst = arith.constant 0.000000e+00 : f32
    %22 = vector.broadcast %cst : f32 to vector<256x128xf32>
    %23 = arith.maximumf %21, %22 : vector<256x128xf32>
    %24 = arith.truncf %23 : vector<256x128xf32> to vector<256x128xbf16>
    %c0_5 = arith.constant 0 : index
    %c0_6 = arith.constant 0 : index
    %25 = vector.load %arg4[%c0_5, %c0_6] : memref<128x128xbf16, #tpu.memory_space<vmem>>, vector<128x128xbf16>
    %cst_7 = arith.constant dense<0.000000e+00> : vector<256x128xf32>
    %26 = tpu.matmul %24, %25, %cst_7 {dimension_numbers = #tpu.dot_dimension_numbers<[1], [0], [0], [1], [0, 0, 1, 1], [], []>} : vector<256x128xbf16>, vector<128x128xbf16>, vector<256x128xf32> -> vector<256x128xf32>
    %c0_8 = arith.constant 0 : index
    %c0_9 = arith.constant 0 : index
    %27 = vector.load %arg5[%c0_8, %c0_9] : memref<1x128xf32, #tpu.memory_space<vmem>>, vector<1x128xf32>
    %28 = vector.broadcast %27 : vector<1x128xf32> to vector<256x128xf32>
    %29 = arith.addf %26, %28 : vector<256x128xf32>
    %cst_10 = arith.constant 0.000000e+00 : f32
    %30 = vector.broadcast %cst_10 : f32 to vector<256x128xf32>
    %31 = arith.maximumf %29, %30 : vector<256x128xf32>
    %32 = arith.truncf %31 : vector<256x128xf32> to vector<256x128xbf16>
    %c0_11 = arith.constant 0 : index
    %c0_12 = arith.constant 0 : index
    %33 = vector.load %arg6[%c0_11, %c0_12] : memref<128x128xbf16, #tpu.memory_space<vmem>>, vector<128x128xbf16>
    %cst_13 = arith.constant dense<0.000000e+00> : vector<256x128xf32>
    %34 = tpu.matmul %32, %33, %cst_13 {dimension_numbers = #tpu.dot_dimension_numbers<[1], [0], [0], [1], [0, 0, 1, 1], [], []>} : vector<256x128xbf16>, vector<128x128xbf16>, vector<256x128xf32> -> vector<256x128xf32>
    %c0_14 = arith.constant 0 : index
    %c0_15 = arith.constant 0 : index
    %35 = vector.load %arg7[%c0_14, %c0_15] : memref<1x128xf32, #tpu.memory_space<vmem>>, vector<1x128xf32>
    %36 = vector.broadcast %35 : vector<1x128xf32> to vector<256x128xf32>
    %37 = arith.addf %34, %36 : vector<256x128xf32>
    %cst_16 = arith.constant 0.000000e+00 : f32
    %38 = vector.broadcast %cst_16 : f32 to vector<256x128xf32>
    %39 = arith.maximumf %37, %38 : vector<256x128xf32>
    %40 = arith.truncf %39 : vector<256x128xf32> to vector<256x128xbf16>
    %c0_17 = arith.constant 0 : index
    %c0_18 = arith.constant 0 : index
    %41 = vector.load %arg8[%c0_17, %c0_18] : memref<128x128xbf16, #tpu.memory_space<vmem>>, vector<128x128xbf16>
    %cst_19 = arith.constant dense<0.000000e+00> : vector<256x128xf32>
    %42 = tpu.matmul %40, %41, %cst_19 {dimension_numbers = #tpu.dot_dimension_numbers<[1], [0], [0], [1], [0, 0, 1, 1], [], []>} : vector<256x128xbf16>, vector<128x128xbf16>, vector<256x128xf32> -> vector<256x128xf32>
    %c0_20 = arith.constant 0 : index
    %c0_21 = arith.constant 0 : index
    %43 = vector.load %arg9[%c0_20, %c0_21] : memref<1x128xf32, #tpu.memory_space<vmem>>, vector<1x128xf32>
    %44 = vector.broadcast %43 : vector<1x128xf32> to vector<256x128xf32>
    %45 = arith.addf %42, %44 : vector<256x128xf32>
    %46 = vector.extract_strided_slice %45 {offsets = [0, 0], sizes = [256, 3], strides = [1, 1]} : vector<256x128xf32> to vector<256x3xf32>
    %cst_22 = arith.constant 0.000000e+00 : f32
    %47 = vector.broadcast %cst_22 : f32 to vector<256x3xf32>
    %48 = arith.subf %47, %46 : vector<256x3xf32>
    %49 = math.exp %48 : vector<256x3xf32>
    %cst_23 = arith.constant 1.000000e+00 : f32
    %50 = vector.broadcast %cst_23 : f32 to vector<256x3xf32>
    %51 = arith.addf %50, %49 : vector<256x3xf32>
    %52 = tpu.reciprocal %51 {approx = true} : vector<256x3xf32> -> vector<256x3xf32>
    %c0_24 = arith.constant 0 : index
    %c0_25 = arith.constant 0 : index
    %53 = vector.load %arg10[%c0_24, %c0_25] : memref<256x3xf32, #tpu.memory_space<vmem>>, vector<256x3xf32>
    tpu.vector_store %arg10[%c0_24, %c0_25], %52 {strides = array<i32>} : memref<256x3xf32, #tpu.memory_space<vmem>>, vector<256x3xf32>,
    return
  }
  func.func @transform_0(%arg0: i32) -> (i32, i32) {
    %c0_i32 = arith.constant 0 : i32
    %c0_i32_0 = arith.constant 0 : i32
    return %arg0, %c0_i32 : i32, i32
  }
  func.func @transform_1(%arg0: i32) -> (i32, i32) {
    %c0_i32 = arith.constant 0 : i32
    %c0_i32_0 = arith.constant 0 : i32
    %c0_i32_1 = arith.constant 0 : i32
    return %c0_i32, %c0_i32_0 : i32, i32
  }
  func.func @transform_2(%arg0: i32) -> (i32, i32) {
    %c0_i32 = arith.constant 0 : i32
    %c0_i32_0 = arith.constant 0 : i32
    %c0_i32_1 = arith.constant 0 : i32
    return %c0_i32, %c0_i32_0 : i32, i32
  }
  func.func @transform_3(%arg0: i32) -> (i32, i32) {
    %c0_i32 = arith.constant 0 : i32
    %c0_i32_0 = arith.constant 0 : i32
    %c0_i32_1 = arith.constant 0 : i32
    return %c0_i32, %c0_i32_0 : i32, i32
  }
  func.func @transform_4(%arg0: i32) -> (i32, i32) {
    %c0_i32 = arith.constant 0 : i32
    %c0_i32_0 = arith.constant 0 : i32
    %c0_i32_1 = arith.constant 0 : i32
    return %c0_i32, %c0_i32_0 : i32, i32
  }
  func.func @transform_5(%arg0: i32) -> (i32, i32) {
    %c0_i32 = arith.constant 0 : i32
    %c0_i32_0 = arith.constant 0 : i32
    %c0_i32_1 = arith.constant 0 : i32
    return %c0_i32, %c0_i32_0 : i32, i32
  }
  func.func @transform_6(%arg0: i32) -> (i32, i32) {
    %c0_i32 = arith.constant 0 : i32
    %c0_i32_0 = arith.constant 0 : i32
    %c0_i32_1 = arith.constant 0 : i32
    return %c0_i32, %c0_i32_0 : i32, i32
  }
  func.func @transform_7(%arg0: i32) -> (i32, i32) {
    %c0_i32 = arith.constant 0 : i32
    %c0_i32_0 = arith.constant 0 : i32
    %c0_i32_1 = arith.constant 0 : i32
    return %c0_i32, %c0_i32_0 : i32, i32
  }
  func.func @transform_8(%arg0: i32) -> (i32, i32) {
    %c0_i32 = arith.constant 0 : i32
    %c0_i32_0 = arith.constant 0 : i32
    %c0_i32_1 = arith.constant 0 : i32
    return %c0_i32, %c0_i32_0 : i32, i32
  }
  func.func @transform_9(%arg0: i32) -> (i32, i32) {
    %c0_i32 = arith.constant 0 : i32
    %c0_i32_0 = arith.constant 0 : i32
    return %arg0, %c0_i32 : i32, i32
  }
}

</mosaic_0001>

<llo_original>
// kernel: tpu_custom_call.1
$region0: #{tpu_custom_call.1}
  #allocation0 [shape = 'u32[]', space=smem, size = 0x4, offset = 0x4, fixed_abs, tag = 'smem constant byte address 0x4 - core index']
  #allocation1 [shape = 'u32[144,128]{1,0:T(1,128)}', space=vmem, size = 0x12000, scoped, tag = 'internal scratch']
  %s0 = inlined_call_operand.vmem [shape: f32[1024,3], index: 0, kind: input, shape index: {}]
  %s1 = inlined_call_operand.vmem [shape: f32[3,128], index: 1, kind: input, shape index: {}]
  %s2 = inlined_call_operand.vmem [shape: f32[1,128], index: 2, kind: input, shape index: {}]
  %s3 = inlined_call_operand.vmem [shape: bf16[128,128], index: 3, kind: input, shape index: {}]
  %s4 = inlined_call_operand.vmem [shape: f32[1,128], index: 4, kind: input, shape index: {}]
  %s5 = inlined_call_operand.vmem [shape: bf16[128,128], index: 5, kind: input, shape index: {}]
  %s6 = inlined_call_operand.vmem [shape: f32[1,128], index: 6, kind: input, shape index: {}]
  %s7 = inlined_call_operand.vmem [shape: bf16[128,128], index: 7, kind: input, shape index: {}]
  %s8 = inlined_call_operand.vmem [shape: f32[1,128], index: 8, kind: input, shape index: {}]
  %s9 = inlined_call_operand.vmem [shape: f32[1024,3], index: 9, kind: output, shape index: {}]
  %s10 = sld [smem:[#allocation0]]
  $region69: #{tpu_custom_call.1} parent=0
    _
  %s12 = ssub.s32 1, %s10
  %s13 = scalar_select 0, %s12, %s10
  loop: start=0, step=1, limit=6
  $region2: #{tpu_custom_call.1} parent=0 // loop_pre_header
    _
  $region3: #{tpu_custom_call.1} parent=0 // loop_header
    %s15 = sphi 0, %s19
    %p16 = scmp.ge.s32.totalorder %s15, 6
    %s25 = sphi 0, %s27
    %s28 = sphi 0, %s25
    %s29 = sphi 0, %s28
    %s45 = sphi 0, %s29
    %s49 = sphi 0, %s49
    %s51 = sphi 0, %s49
    %s52 = sphi 0, %s51
    %s66 = sphi 0, %s52
    %s70 = sphi 0, %s70
    %s72 = sphi 0, %s70
    %s73 = sphi 0, %s72
    %s87 = sphi 0, %s73
    %s91 = sphi 0, %s91
    %s93 = sphi 0, %s91
    %s94 = sphi 0, %s93
    %s108 = sphi 0, %s94
    %s112 = sphi 0, %s112
    %s114 = sphi 0, %s112
    %s115 = sphi 0, %s114
    %s129 = sphi 0, %s115
    %s133 = sphi 0, %s133
    %s135 = sphi 0, %s133
    %s136 = sphi 0, %s135
    %s150 = sphi 0, %s136
    %s154 = sphi 0, %s154
    %s156 = sphi 0, %s154
    %s157 = sphi 0, %s156
    %s171 = sphi 0, %s157
    %s175 = sphi 0, %s175
    %s177 = sphi 0, %s175
    %s178 = sphi 0, %s177
    %s192 = sphi 0, %s178
    %s196 = sphi 0, %s196
    %s198 = sphi 0, %s196
    %s199 = sphi 0, %s198
    %s213 = sphi 0, %s199
    %s219 = sphi 0, %s221
    %s222 = sphi 0, %s219
    %s223 = sphi 0, %s222
    %s239 = sphi 0, %s223
  $region4: #{tpu_custom_call.1} parent=0 // loop_header_branch
    %18 = sbr.rel (%p16) target = $region8
  $region5: #{tpu_custom_call.1} parent=0 // loop_body
    %s20 = ssub.s32 %s15, 1
    %s21 = ssub.s32 %s15, 2
    %s22 = sadd.s32 %s15, 1
    %s23 = ssub.s32 %s15, %s22
    %p24 = scmp.eq.s32.totalorder %s23, 0
    %s26 = sadd.s32 %s25, 1
    %s27 = scalar_select %p24, %s25, %s26
    %p30 = pneg %p24
    %p31 = scmp.eq.s32.totalorder %s15, 3
    %p32 = por %p30, %p31
    %p33 = scmp.ne.s32.totalorder %s25, %s28
    %p34 = scmp.eq.s32.totalorder %s15, 0
    %p35 = por %p33, %p34
    %p36 = scmp.ne.s32.totalorder %s25, %s28
    %p37 = scmp.eq.s32.totalorder %s20, 3
    %p38 = por %p36, %p37
    %p39 = scmp.ne.s32.totalorder %s28, %s29
    %p40 = scmp.eq.s32.totalorder %s20, 0
    %p41 = por %p39, %p40
    %p42 = scmp.ne.s32.totalorder %s28, %s29
    %p43 = scmp.eq.s32.totalorder %s21, 3
    %p44 = por %p42, %p43
    %p46 = scmp.ne.s32.totalorder %s29, %s45
    %p47 = scmp.eq.s32.totalorder %s21, 0
    %p48 = por %p46, %p47
    %s50 = sadd.s32 %s49, 1
    %p53 = scmp.eq.s32.totalorder %s15, 3
    %p54 = scmp.ne.s32.totalorder %s49, %s51
    %p55 = scmp.eq.s32.totalorder %s15, 0
    %p56 = por %p54, %p55
    %p57 = scmp.ne.s32.totalorder %s49, %s51
    %p58 = scmp.eq.s32.totalorder %s20, 3
    %p59 = por %p57, %p58
    %p60 = scmp.ne.s32.totalorder %s51, %s52
    %p61 = scmp.eq.s32.totalorder %s20, 0
    %p62 = por %p60, %p61
    %p63 = scmp.ne.s32.totalorder %s51, %s52
    %p64 = scmp.eq.s32.totalorder %s21, 3
    %p65 = por %p63, %p64
    %p67 = scmp.ne.s32.totalorder %s52, %s66
    %p68 = scmp.eq.s32.totalorder %s21, 0
    %p69 = por %p67, %p68
    %s71 = sadd.s32 %s70, 1
    %p74 = scmp.eq.s32.totalorder %s15, 3
    %p75 = scmp.ne.s32.totalorder %s70, %s72
    %p76 = scmp.eq.s32.totalorder %s15, 0
    %p77 = por %p75, %p76
    %p78 = scmp.ne.s32.totalorder %s70, %s72
    %p79 = scmp.eq.s32.totalorder %s20, 3
    %p80 = por %p78, %p79
    %p81 = scmp.ne.s32.totalorder %s72, %s73
    %p82 = scmp.eq.s32.totalorder %s20, 0
    %p83 = por %p81, %p82
    %p84 = scmp.ne.s32.totalorder %s72, %s73
    %p85 = scmp.eq.s32.totalorder %s21, 3
    %p86 = por %p84, %p85
    %p88 = scmp.ne.s32.totalorder %s73, %s87
    %p89 = scmp.eq.s32.totalorder %s21, 0
    %p90 = por %p88, %p89
    %s92 = sadd.s32 %s91, 1
    %p95 = scmp.eq.s32.totalorder %s15, 3
    %p96 = scmp.ne.s32.totalorder %s91, %s93
    %p97 = scmp.eq.s32.totalorder %s15, 0
    %p98 = por %p96, %p97
    %p99 = scmp.ne.s32.totalorder %s91, %s93
    %p100 = scmp.eq.s32.totalorder %s20, 3
    %p101 = por %p99, %p100
    %p102 = scmp.ne.s32.totalorder %s93, %s94
    %p103 = scmp.eq.s32.totalorder %s20, 0
    %p104 = por %p102, %p103
    %p105 = scmp.ne.s32.totalorder %s93, %s94
    %p106 = scmp.eq.s32.totalorder %s21, 3
    %p107 = por %p105, %p106
    %p109 = scmp.ne.s32.totalorder %s94, %s108
    %p110 = scmp.eq.s32.totalorder %s21, 0
    %p111 = por %p109, %p110
    %s113 = sadd.s32 %s112, 1
    %p116 = scmp.eq.s32.totalorder %s15, 3
    %p117 = scmp.ne.s32.totalorder %s112, %s114
    %p118 = scmp.eq.s32.totalorder %s15, 0
    %p119 = por %p117, %p118
    %p120 = scmp.ne.s32.totalorder %s112, %s114
    %p121 = scmp.eq.s32.totalorder %s20, 3
    %p122 = por %p120, %p121
    %p123 = scmp.ne.s32.totalorder %s114, %s115
    %p124 = scmp.eq.s32.totalorder %s20, 0
    %p125 = por %p123, %p124
    %p126 = scmp.ne.s32.totalorder %s114, %s115
    %p127 = scmp.eq.s32.totalorder %s21, 3
    %p128 = por %p126, %p127
    %p130 = scmp.ne.s32.totalorder %s115, %s129
    %p131 = scmp.eq.s32.totalorder %s21, 0
    %p132 = por %p130, %p131
    %s134 = sadd.s32 %s133, 1
    %p137 = scmp.eq.s32.totalorder %s15, 3
    %p138 = scmp.ne.s32.totalorder %s133, %s135
    %p139 = scmp.eq.s32.totalorder %s15, 0
    %p140 = por %p138, %p139
    %p141 = scmp.ne.s32.totalorder %s133, %s135
    %p142 = scmp.eq.s32.totalorder %s20, 3
    %p143 = por %p141, %p142
    %p144 = scmp.ne.s32.totalorder %s135, %s136
    %p145 = scmp.eq.s32.totalorder %s20, 0
    %p146 = por %p144, %p145
    %p147 = scmp.ne.s32.totalorder %s135, %s136
    %p148 = scmp.eq.s32.totalorder %s21, 3
    %p149 = por %p147, %p148
    %p151 = scmp.ne.s32.totalorder %s136, %s150
    %p152 = scmp.eq.s32.totalorder %s21, 0
    %p153 = por %p151, %p152
    %s155 = sadd.s32 %s154, 1
    %p158 = scmp.eq.s32.totalorder %s15, 3
    %p159 = scmp.ne.s32.totalorder %s154, %s156
    %p160 = scmp.eq.s32.totalorder %s15, 0
    %p161 = por %p159, %p160
    %p162 = scmp.ne.s32.totalorder %s154, %s156
    %p163 = scmp.eq.s32.totalorder %s20, 3
    %p164 = por %p162, %p163
    %p165 = scmp.ne.s32.totalorder %s156, %s157
    %p166 = scmp.eq.s32.totalorder %s20, 0
    %p167 = por %p165, %p166
    %p168 = scmp.ne.s32.totalorder %s156, %s157
    %p169 = scmp.eq.s32.totalorder %s21, 3
    %p170 = por %p168, %p169
    %p172 = scmp.ne.s32.totalorder %s157, %s171
    %p173 = scmp.eq.s32.totalorder %s21, 0
    %p174 = por %p172, %p173
    %s176 = sadd.s32 %s175, 1
    %p179 = scmp.eq.s32.totalorder %s15, 3
    %p180 = scmp.ne.s32.totalorder %s175, %s177
    %p181 = scmp.eq.s32.totalorder %s15, 0
    %p182 = por %p180, %p181
    %p183 = scmp.ne.s32.totalorder %s175, %s177
    %p184 = scmp.eq.s32.totalorder %s20, 3
    %p185 = por %p183, %p184
    %p186 = scmp.ne.s32.totalorder %s177, %s178
    %p187 = scmp.eq.s32.totalorder %s20, 0
    %p188 = por %p186, %p187
    %p189 = scmp.ne.s32.totalorder %s177, %s178
    %p190 = scmp.eq.s32.totalorder %s21, 3
    %p191 = por %p189, %p190
    %p193 = scmp.ne.s32.totalorder %s178, %s192
    %p194 = scmp.eq.s32.totalorder %s21, 0
    %p195 = por %p193, %p194
    %s197 = sadd.s32 %s196, 1
    %p200 = scmp.eq.s32.totalorder %s15, 3
    %p201 = scmp.ne.s32.totalorder %s196, %s198
    %p202 = scmp.eq.s32.totalorder %s15, 0
    %p203 = por %p201, %p202
    %p204 = scmp.ne.s32.totalorder %s196, %s198
    %p205 = scmp.eq.s32.totalorder %s20, 3
    %p206 = por %p204, %p205
    %p207 = scmp.ne.s32.totalorder %s198, %s199
    %p208 = scmp.eq.s32.totalorder %s20, 0
    %p209 = por %p207, %p208
    %p210 = scmp.ne.s32.totalorder %s198, %s199
    %p211 = scmp.eq.s32.totalorder %s21, 3
    %p212 = por %p210, %p211
    %p214 = scmp.ne.s32.totalorder %s199, %s213
    %p215 = scmp.eq.s32.totalorder %s21, 0
    %p216 = por %p214, %p215
    %s217 = ssub.s32 %s15, %s22
    %p218 = scmp.eq.s32.totalorder %s217, 0
    %s220 = sadd.s32 %s219, 1
    %s221 = scalar_select %p218, %s219, %s220
    %p224 = pneg %p218
    %p225 = scmp.eq.s32.totalorder %s15, 3
    %p226 = por %p224, %p225
    %p227 = scmp.ne.s32.totalorder %s219, %s222
    %p228 = scmp.eq.s32.totalorder %s15, 0
    %p229 = por %p227, %p228
    %p230 = scmp.ne.s32.totalorder %s219, %s222
    %p231 = scmp.eq.s32.totalorder %s20, 3
    %p232 = por %p230, %p231
    %p233 = scmp.ne.s32.totalorder %s222, %s223
    %p234 = scmp.eq.s32.totalorder %s20, 0
    %p235 = por %p233, %p234
    %p236 = scmp.ne.s32.totalorder %s222, %s223
    %p237 = scmp.eq.s32.totalorder %s21, 3
    %p238 = por %p236, %p237
    %p240 = scmp.ne.s32.totalorder %s223, %s239
    %p241 = scmp.eq.s32.totalorder %s21, 0
    %p242 = por %p240, %p241
    %p243 = scmp.le.s32.totalorder 1, %s15
    %p244 = scmp.lt.s32.totalorder %s15, 5
    %p245 = pnand %p243, %p244
    %p246 = pneg %p245
    // Predicated region
    $region9: #{tpu_custom_call.1} parent=5 // pred_check
      _
    $region10: #{tpu_custom_call.1} parent=5 // pred_check_branch
      %248 = sbr.rel (%p245) target = $region12
    $region11: #{tpu_custom_call.1} parent=5 // pred_region
      %s249 = ssub.s32 %s15, 1
      // Predicated region
      $region13: #{tpu_custom_call.1} parent=11 // pred_check
        %p250 = pneg %p62
      $region14: #{tpu_custom_call.1} parent=11 // pred_check_branch
        %252 = sbr.rel (%p250) target = $region16
      $region15: #{tpu_custom_call.1} parent=11 // pred_region
        _
      $region16: #{tpu_custom_call.1} parent=11 // pred_fallthru
        _
      // Predicated region
      $region17: #{tpu_custom_call.1} parent=11 // pred_check
        %p253 = pneg %p83
      $region18: #{tpu_custom_call.1} parent=11 // pred_check_branch
        %255 = sbr.rel (%p253) target = $region20
      $region19: #{tpu_custom_call.1} parent=11 // pred_region
        _
      $region20: #{tpu_custom_call.1} parent=11 // pred_fallthru
        _
      // Predicated region
      $region21: #{tpu_custom_call.1} parent=11 // pred_check
        %p256 = pneg %p104
      $region22: #{tpu_custom_call.1} parent=11 // pred_check_branch
        %258 = sbr.rel (%p256) target = $region24
      $region23: #{tpu_custom_call.1} parent=11 // pred_region
        _
      $region24: #{tpu_custom_call.1} parent=11 // pred_fallthru
        _
      // Predicated region
      $region25: #{tpu_custom_call.1} parent=11 // pred_check
        %p259 = pneg %p125
      $region26: #{tpu_custom_call.1} parent=11 // pred_check_branch
        %261 = sbr.rel (%p259) target = $region28
      $region27: #{tpu_custom_call.1} parent=11 // pred_region
        _
      $region28: #{tpu_custom_call.1} parent=11 // pred_fallthru
        _
      // Predicated region
      $region29: #{tpu_custom_call.1} parent=11 // pred_check
        %p262 = pneg %p146
      $region30: #{tpu_custom_call.1} parent=11 // pred_check_branch
        %264 = sbr.rel (%p262) target = $region32
      $region31: #{tpu_custom_call.1} parent=11 // pred_region
        _
      $region32: #{tpu_custom_call.1} parent=11 // pred_fallthru
        _
      // Predicated region
      $region33: #{tpu_custom_call.1} parent=11 // pred_check
        %p265 = pneg %p167
      $region34: #{tpu_custom_call.1} parent=11 // pred_check_branch
        %267 = sbr.rel (%p265) target = $region36
      $region35: #{tpu_custom_call.1} parent=11 // pred_region
        _
      $region36: #{tpu_custom_call.1} parent=11 // pred_fallthru
        _
      // Predicated region
      $region37: #{tpu_custom_call.1} parent=11 // pred_check
        %p268 = pneg %p188
      $region38: #{tpu_custom_call.1} parent=11 // pred_check_branch
        %270 = sbr.rel (%p268) target = $region40
      $region39: #{tpu_custom_call.1} parent=11 // pred_region
        _
      $region40: #{tpu_custom_call.1} parent=11 // pred_fallthru
        _
      // Predicated region
      $region41: #{tpu_custom_call.1} parent=11 // pred_check
        %p271 = pneg %p209
      $region42: #{tpu_custom_call.1} parent=11 // pred_check_branch
        %273 = sbr.rel (%p271) target = $region44
      $region43: #{tpu_custom_call.1} parent=11 // pred_region
        _
      $region44: #{tpu_custom_call.1} parent=11 // pred_fallthru
        _
    $region12: #{tpu_custom_call.1} parent=5 // pred_fallthru
      _
    %p274 = scmp.lt.s32.totalorder %s15, 4
    // Predicated region
    $region45: #{tpu_custom_call.1} parent=5 // pred_check
      %p275 = pneg %p274
    $region46: #{tpu_custom_call.1} parent=5 // pred_check_branch
      %277 = sbr.rel (%p275) target = $region48
    $region47: #{tpu_custom_call.1} parent=5 // pred_region
      // Predicated region
      $region49: #{tpu_custom_call.1} parent=47 // pred_check
        %p278 = pneg %p35
      $region50: #{tpu_custom_call.1} parent=47 // pred_check_branch
        %280 = sbr.rel (%p278) target = $region52
      $region51: #{tpu_custom_call.1} parent=47 // pred_region
        %s281 = smul.u32 32, %s15
        %p282 = scmp.lt.s32.totalorder %s281, 127
        %s283 = scalar_select %p282, %s281, 127
        %s284 = smul.addr %s283, 8
        %s285 = scalar_lea.vmem %s0, %s284
        %s286 = smul.u32 32, %s15
      $region52: #{tpu_custom_call.1} parent=47 // pred_fallthru
        _
    $region48: #{tpu_custom_call.1} parent=5 // pred_fallthru
      _
    %p287 = scmp.le.s32.totalorder 1, %s15
    %p288 = scmp.lt.s32.totalorder %s15, 5
    %p289 = pnand %p287, %p288
    %p290 = pneg %p289
    // Predicated region
    $region53: #{tpu_custom_call.1} parent=5 // pred_check
      _
    $region54: #{tpu_custom_call.1} parent=5 // pred_check_branch
      %292 = sbr.rel (%p289) target = $region56
    $region55: #{tpu_custom_call.1} parent=5 // pred_region
      %s293 = ssub.s32 %s15, 1
      %s294 = smul.u32 32, %s20
      %p295 = scmp.lt.s32.totalorder %s294, 127
      %s296 = scalar_select %p295, %s294, 127
      %s297 = smul.addr %s296, 8
      %s298 = scalar_lea.vmem %s0, %s297
      %p299 = pneg %p41
      %p300 = pneg %p38
      %p301 = pneg %p62
      %p302 = pneg %p59
      %p303 = pneg %p83
      %p304 = pneg %p80
      %p305 = pneg %p104
      %p306 = pneg %p101
      %p307 = pneg %p125
      %p308 = pneg %p122
      %p309 = pneg %p146
      %p310 = pneg %p143
      %p311 = pneg %p167
      %p312 = pneg %p164
      %p313 = pneg %p188
      %p314 = pneg %p185
      %p315 = pneg %p209
      %p316 = pneg %p206
      %p317 = pneg %p235
      %p318 = pneg %p232
      %s319 = smul.u32 32, %s20
      %p320 = scmp.lt.s32.totalorder %s319, 127
      %s321 = scalar_select %p320, %s319, 127
      %s322 = smul.addr %s321, 8
      %s323 = scalar_lea.vmem %s9, %s322
      %s324 = smul.u32 32, %s20
      %p325 = scmp.lt.s32.totalorder %s324, 127
      %s326 = scalar_select %p325, %s324, 127
      %s327 = smul.addr %s326, 8
      %s328 = scalar_lea.vmem %s0, %s327
      %s329 = smul.u32 32, %s20
      %s330 = smul.u32 32, %s20
      %p331 = scmp.lt.s32.totalorder %s330, 127
      %s332 = scalar_select %p331, %s330, 127
      %s333 = smul.addr %s332, 8
      %s334 = scalar_lea.vmem %s9, %s333
      %s335 = smul.u32 32, %s20
      %v337 = vld [vmem:[%s328] sm:$0xff]
      %v338 = vld [vmem:[%s328 + $0x8] sm:$0xff]
      %v339 = vld [vmem:[%s328 + $0x10] sm:$0xff]
      %v340 = vld [vmem:[%s328 + $0x18] sm:$0xff]
      %v341 = vld [vmem:[%s328 + $0x20] sm:$0xff]
      %v342 = vld [vmem:[%s328 + $0x28] sm:$0xff]
      %v343 = vld [vmem:[%s328 + $0x30] sm:$0xff]
      %v344 = vld [vmem:[%s328 + $0x38] sm:$0xff]
      %v345 = vld [vmem:[%s328 + $0x40] sm:$0xff]
      %v346 = vld [vmem:[%s328 + $0x48] sm:$0xff]
      %v347 = vld [vmem:[%s328 + $0x50] sm:$0xff]
      %v348 = vld [vmem:[%s328 + $0x58] sm:$0xff]
      %v349 = vld [vmem:[%s328 + $0x60] sm:$0xff]
      %v350 = vld [vmem:[%s328 + $0x68] sm:$0xff]
      %v351 = vld [vmem:[%s328 + $0x70] sm:$0xff]
      %v352 = vld [vmem:[%s328 + $0x78] sm:$0xff]
      %v353 = vld [vmem:[%s328 + $0x80] sm:$0xff]
      %v354 = vld [vmem:[%s328 + $0x88] sm:$0xff]
      %v355 = vld [vmem:[%s328 + $0x90] sm:$0xff]
      %v356 = vld [vmem:[%s328 + $0x98] sm:$0xff]
      %v357 = vld [vmem:[%s328 + $0xa0] sm:$0xff]
      %v358 = vld [vmem:[%s328 + $0xa8] sm:$0xff]
      %v359 = vld [vmem:[%s328 + $0xb0] sm:$0xff]
      %v360 = vld [vmem:[%s328 + $0xb8] sm:$0xff]
      %v361 = vld [vmem:[%s328 + $0xc0] sm:$0xff]
      %v362 = vld [vmem:[%s328 + $0xc8] sm:$0xff]
      %v363 = vld [vmem:[%s328 + $0xd0] sm:$0xff]
      %v364 = vld [vmem:[%s328 + $0xd8] sm:$0xff]
      %v365 = vld [vmem:[%s328 + $0xe0] sm:$0xff]
      %v366 = vld [vmem:[%s328 + $0xe8] sm:$0xff]
      %v367 = vld [vmem:[%s328 + $0xf0] sm:$0xff]
      %v368 = vld [vmem:[%s328 + $0xf8] sm:$0xff]
      %v369 = vld [vmem:[%s1] sm:$0x7]
      %v370 = vld [vmem:[%s2] sm:$0x1]
      %372 = vset.pattern.permute.xlu0 0
      %373 = vperm.xlu0 %372, %v337
      %v374 = vpop.permute.xlu0 %373
      %377 = vset.pattern.permute.xlu0 0
      %378 = vperm.xlu0 %377, %v338
      %v379 = vpop.permute.xlu0 %378
      %382 = vset.pattern.permute.xlu0 0
      %383 = vperm.xlu0 %382, %v339
      %v384 = vpop.permute.xlu0 %383
      %387 = vset.pattern.permute.xlu0 0
      %388 = vperm.xlu0 %387, %v340
      %v389 = vpop.permute.xlu0 %388
      %392 = vset.pattern.permute.xlu0 0
      %393 = vperm.xlu0 %392, %v341
      %v394 = vpop.permute.xlu0 %393
      %397 = vset.pattern.permute.xlu0 0
      %398 = vperm.xlu0 %397, %v342
      %v399 = vpop.permute.xlu0 %398
      %402 = vset.pattern.permute.xlu0 0
      %403 = vperm.xlu0 %402, %v343
      %v404 = vpop.permute.xlu0 %403
      %407 = vset.pattern.permute.xlu0 0
      %408 = vperm.xlu0 %407, %v344
      %v409 = vpop.permute.xlu0 %408
      %412 = vset.pattern.permute.xlu0 0
      %413 = vperm.xlu0 %412, %v345
      %v414 = vpop.permute.xlu0 %413
      %417 = vset.pattern.permute.xlu0 0
      %418 = vperm.xlu0 %417, %v346
      %v419 = vpop.permute.xlu0 %418
      %422 = vset.pattern.permute.xlu0 0
      %423 = vperm.xlu0 %422, %v347
      %v424 = vpop.permute.xlu0 %423
      %427 = vset.pattern.permute.xlu0 0
      %428 = vperm.xlu0 %427, %v348
      %v429 = vpop.permute.xlu0 %428
      %432 = vset.pattern.permute.xlu0 0
      %433 = vperm.xlu0 %432, %v349
      %v434 = vpop.permute.xlu0 %433
      %437 = vset.pattern.permute.xlu0 0
      %438 = vperm.xlu0 %437, %v350
      %v439 = vpop.permute.xlu0 %438
      %442 = vset.pattern.permute.xlu0 0
      %443 = vperm.xlu0 %442, %v351
      %v444 = vpop.permute.xlu0 %443
      %447 = vset.pattern.permute.xlu0 0
      %448 = vperm.xlu0 %447, %v352
      %v449 = vpop.permute.xlu0 %448
      %452 = vset.pattern.permute.xlu0 0
      %453 = vperm.xlu0 %452, %v353
      %v454 = vpop.permute.xlu0 %453
      %457 = vset.pattern.permute.xlu0 0
      %458 = vperm.xlu0 %457, %v354
      %v459 = vpop.permute.xlu0 %458
      %462 = vset.pattern.permute.xlu0 0
      %463 = vperm.xlu0 %462, %v355
      %v464 = vpop.permute.xlu0 %463
      %467 = vset.pattern.permute.xlu0 0
      %468 = vperm.xlu0 %467, %v356
      %v469 = vpop.permute.xlu0 %468
      %472 = vset.pattern.permute.xlu0 0
      %473 = vperm.xlu0 %472, %v357
      %v474 = vpop.permute.xlu0 %473
      %477 = vset.pattern.permute.xlu0 0
      %478 = vperm.xlu0 %477, %v358
      %v479 = vpop.permute.xlu0 %478
      %482 = vset.pattern.permute.xlu0 0
      %483 = vperm.xlu0 %482, %v359
      %v484 = vpop.permute.xlu0 %483
      %487 = vset.pattern.permute.xlu0 0
      %488 = vperm.xlu0 %487, %v360
      %v489 = vpop.permute.xlu0 %488
      %492 = vset.pattern.permute.xlu0 0
      %493 = vperm.xlu0 %492, %v361
      %v494 = vpop.permute.xlu0 %493
      %497 = vset.pattern.permute.xlu0 0
      %498 = vperm.xlu0 %497, %v362
      %v499 = vpop.permute.xlu0 %498
      %502 = vset.pattern.permute.xlu0 0
      %503 = vperm.xlu0 %502, %v363
      %v504 = vpop.permute.xlu0 %503
      %507 = vset.pattern.permute.xlu0 0
      %508 = vperm.xlu0 %507, %v364
      %v509 = vpop.permute.xlu0 %508
      %512 = vset.pattern.permute.xlu0 0
      %513 = vperm.xlu0 %512, %v365
      %v514 = vpop.permute.xlu0 %513
      %517 = vset.pattern.permute.xlu0 0
      %518 = vperm.xlu0 %517, %v366
      %v519 = vpop.permute.xlu0 %518
      %522 = vset.pattern.permute.xlu0 0
      %523 = vperm.xlu0 %522, %v367
      %v524 = vpop.permute.xlu0 %523
      %527 = vset.pattern.permute.xlu0 0
      %528 = vperm.xlu0 %527, %v368
      %v529 = vpop.permute.xlu0 %528
      %v531 = vlaneseq
      %v532 = vshrl.u32 %v531, 7
      %v533 = vsub.s32 0, %v532
      %v534 = vrot.slane %v369, %v533
      %v535 = vmul.f32 %v374, %v534
      %v536 = vmul.f32 %v379, %v534
      %v537 = vmul.f32 %v384, %v534
      %v538 = vmul.f32 %v389, %v534
      %v539 = vmul.f32 %v394, %v534
      %v540 = vmul.f32 %v399, %v534
      %v541 = vmul.f32 %v404, %v534
      %v542 = vmul.f32 %v409, %v534
      %v543 = vmul.f32 %v414, %v534
      %v544 = vmul.f32 %v419, %v534
      %v545 = vmul.f32 %v424, %v534
      %v546 = vmul.f32 %v429, %v534
      %v547 = vmul.f32 %v434, %v534
      %v548 = vmul.f32 %v439, %v534
      %v549 = vmul.f32 %v444, %v534
      %v550 = vmul.f32 %v449, %v534
      %v551 = vmul.f32 %v454, %v534
      %v552 = vmul.f32 %v459, %v534
      %v553 = vmul.f32 %v464, %v534
      %v554 = vmul.f32 %v469, %v534
      %v555 = vmul.f32 %v474, %v534
      %v556 = vmul.f32 %v479, %v534
      %v557 = vmul.f32 %v484, %v534
      %v558 = vmul.f32 %v489, %v534
      %v559 = vmul.f32 %v494, %v534
      %v560 = vmul.f32 %v499, %v534
      %v561 = vmul.f32 %v504, %v534
      %v562 = vmul.f32 %v509, %v534
      %v563 = vmul.f32 %v514, %v534
      %v564 = vmul.f32 %v519, %v534
      %v565 = vmul.f32 %v524, %v534
      %v566 = vmul.f32 %v529, %v534
      %v568 = vlaneseq
      %v569 = vshrl.u32 %v568, 7
      %v570 = vsub.s32 0, %v569
      %v571 = vrot.slane %v370, %v570
      %v573 = vadd.f32 %v571, %v535
      %v574 = vadd.f32 %v571, %v536
      %v575 = vadd.f32 %v571, %v537
      %v576 = vadd.f32 %v571, %v538
      %v577 = vadd.f32 %v571, %v539
      %v578 = vadd.f32 %v571, %v540
      %v579 = vadd.f32 %v571, %v541
      %v580 = vadd.f32 %v571, %v542
      %v581 = vadd.f32 %v571, %v543
      %v582 = vadd.f32 %v571, %v544
      %v583 = vadd.f32 %v571, %v545
      %v584 = vadd.f32 %v571, %v546
      %v585 = vadd.f32 %v571, %v547
      %v586 = vadd.f32 %v571, %v548
      %v587 = vadd.f32 %v571, %v549
      %v588 = vadd.f32 %v571, %v550
      %v589 = vadd.f32 %v571, %v551
      %v590 = vadd.f32 %v571, %v552
      %v591 = vadd.f32 %v571, %v553
      %v592 = vadd.f32 %v571, %v554
      %v593 = vadd.f32 %v571, %v555
      %v594 = vadd.f32 %v571, %v556
      %v595 = vadd.f32 %v571, %v557
      %v596 = vadd.f32 %v571, %v558
      %v597 = vadd.f32 %v571, %v559
      %v598 = vadd.f32 %v571, %v560
      %v599 = vadd.f32 %v571, %v561
      %v600 = vadd.f32 %v571, %v562
      %v601 = vadd.f32 %v571, %v563
      %v602 = vadd.f32 %v571, %v564
      %v603 = vadd.f32 %v571, %v565
      %v604 = vadd.f32 %v571, %v566
      %605 = vset.pattern.permute.xlu0 1
      %606 = vperm.xlu0 %605, %v337
      %v607 = vpop.permute.xlu0 %606
      %609 = vset.pattern.permute.xlu0 1
      %610 = vperm.xlu0 %609, %v338
      %v611 = vpop.permute.xlu0 %610
      %613 = vset.pattern.permute.xlu0 1
      %614 = vperm.xlu0 %613, %v339
      %v615 = vpop.permute.xlu0 %614
      %617 = vset.pattern.permute.xlu0 1
      %618 = vperm.xlu0 %617, %v340
      %v619 = vpop.permute.xlu0 %618
      %621 = vset.pattern.permute.xlu0 1
      %622 = vperm.xlu0 %621, %v341
      %v623 = vpop.permute.xlu0 %622
      %625 = vset.pattern.permute.xlu0 1
      %626 = vperm.xlu0 %625, %v342
      %v627 = vpop.permute.xlu0 %626
      %629 = vset.pattern.permute.xlu0 1
      %630 = vperm.xlu0 %629, %v343
      %v631 = vpop.permute.xlu0 %630
      %633 = vset.pattern.permute.xlu0 1
      %634 = vperm.xlu0 %633, %v344
      %v635 = vpop.permute.xlu0 %634
      %637 = vset.pattern.permute.xlu0 1
      %638 = vperm.xlu0 %637, %v345
      %v639 = vpop.permute.xlu0 %638
      %641 = vset.pattern.permute.xlu0 1
      %642 = vperm.xlu0 %641, %v346
      %v643 = vpop.permute.xlu0 %642
      %645 = vset.pattern.permute.xlu0 1
      %646 = vperm.xlu0 %645, %v347
      %v647 = vpop.permute.xlu0 %646
      %649 = vset.pattern.permute.xlu0 1
      %650 = vperm.xlu0 %649, %v348
      %v651 = vpop.permute.xlu0 %650
      %653 = vset.pattern.permute.xlu0 1
      %654 = vperm.xlu0 %653, %v349
      %v655 = vpop.permute.xlu0 %654
      %657 = vset.pattern.permute.xlu0 1
      %658 = vperm.xlu0 %657, %v350
      %v659 = vpop.permute.xlu0 %658
      %661 = vset.pattern.permute.xlu0 1
      %662 = vperm.xlu0 %661, %v351
      %v663 = vpop.permute.xlu0 %662
      %665 = vset.pattern.permute.xlu0 1
      %666 = vperm.xlu0 %665, %v352
      %v667 = vpop.permute.xlu0 %666
      %669 = vset.pattern.permute.xlu0 1
      %670 = vperm.xlu0 %669, %v353
      %v671 = vpop.permute.xlu0 %670
      %673 = vset.pattern.permute.xlu0 1
      %674 = vperm.xlu0 %673, %v354
      %v675 = vpop.permute.xlu0 %674
      %677 = vset.pattern.permute.xlu0 1
      %678 = vperm.xlu0 %677, %v355
      %v679 = vpop.permute.xlu0 %678
      %681 = vset.pattern.permute.xlu0 1
      %682 = vperm.xlu0 %681, %v356
      %v683 = vpop.permute.xlu0 %682
      %685 = vset.pattern.permute.xlu0 1
      %686 = vperm.xlu0 %685, %v357
      %v687 = vpop.permute.xlu0 %686
      %689 = vset.pattern.permute.xlu0 1
      %690 = vperm.xlu0 %689, %v358
      %v691 = vpop.permute.xlu0 %690
      %693 = vset.pattern.permute.xlu0 1
      %694 = vperm.xlu0 %693, %v359
      %v695 = vpop.permute.xlu0 %694
      %697 = vset.pattern.permute.xlu0 1
      %698 = vperm.xlu0 %697, %v360
      %v699 = vpop.permute.xlu0 %698
      %701 = vset.pattern.permute.xlu0 1
      %702 = vperm.xlu0 %701, %v361
      %v703 = vpop.permute.xlu0 %702
      %705 = vset.pattern.permute.xlu0 1
      %706 = vperm.xlu0 %705, %v362
      %v707 = vpop.permute.xlu0 %706
      %709 = vset.pattern.permute.xlu0 1
      %710 = vperm.xlu0 %709, %v363
      %v711 = vpop.permute.xlu0 %710
      %713 = vset.pattern.permute.xlu0 1
      %714 = vperm.xlu0 %713, %v364
      %v715 = vpop.permute.xlu0 %714
      %717 = vset.pattern.permute.xlu0 1
      %718 = vperm.xlu0 %717, %v365
      %v719 = vpop.permute.xlu0 %718
      %721 = vset.pattern.permute.xlu0 1
      %722 = vperm.xlu0 %721, %v366
      %v723 = vpop.permute.xlu0 %722
      %725 = vset.pattern.permute.xlu0 1
      %726 = vperm.xlu0 %725, %v367
      %v727 = vpop.permute.xlu0 %726
      %729 = vset.pattern.permute.xlu0 1
      %730 = vperm.xlu0 %729, %v368
      %v731 = vpop.permute.xlu0 %730
      %v733 = vlaneseq
      %v734 = vshrl.u32 %v733, 7
      %v735 = vsub.s32 1, %v734
      %v736 = vrot.slane %v369, %v735
      %v737 = vmul.f32 %v607, %v736
      %v738 = vmul.f32 %v611, %v736
      %v739 = vmul.f32 %v615, %v736
      %v740 = vmul.f32 %v619, %v736
      %v741 = vmul.f32 %v623, %v736
      %v742 = vmul.f32 %v627, %v736
      %v743 = vmul.f32 %v631, %v736
      %v744 = vmul.f32 %v635, %v736
      %v745 = vmul.f32 %v639, %v736
      %v746 = vmul.f32 %v643, %v736
      %v747 = vmul.f32 %v647, %v736
      %v748 = vmul.f32 %v651, %v736
      %v749 = vmul.f32 %v655, %v736
      %v750 = vmul.f32 %v659, %v736
      %v751 = vmul.f32 %v663, %v736
      %v752 = vmul.f32 %v667, %v736
      %v753 = vmul.f32 %v671, %v736
      %v754 = vmul.f32 %v675, %v736
      %v755 = vmul.f32 %v679, %v736
      %v756 = vmul.f32 %v683, %v736
      %v757 = vmul.f32 %v687, %v736
      %v758 = vmul.f32 %v691, %v736
      %v759 = vmul.f32 %v695, %v736
      %v760 = vmul.f32 %v699, %v736
      %v761 = vmul.f32 %v703, %v736
      %v762 = vmul.f32 %v707, %v736
      %v763 = vmul.f32 %v711, %v736
      %v764 = vmul.f32 %v715, %v736
      %v765 = vmul.f32 %v719, %v736
      %v766 = vmul.f32 %v723, %v736
      %v767 = vmul.f32 %v727, %v736
      %v768 = vmul.f32 %v731, %v736
      %v769 = vadd.f32 %v573, %v737
      %v770 = vadd.f32 %v574, %v738
      %v771 = vadd.f32 %v575, %v739
      %v772 = vadd.f32 %v576, %v740
      %v773 = vadd.f32 %v577, %v741
      %v774 = vadd.f32 %v578, %v742
      %v775 = vadd.f32 %v579, %v743
      %v776 = vadd.f32 %v580, %v744
      %v777 = vadd.f32 %v581, %v745
      %v778 = vadd.f32 %v582, %v746
      %v779 = vadd.f32 %v583, %v747
      %v780 = vadd.f32 %v584, %v748
      %v781 = vadd.f32 %v585, %v749
      %v782 = vadd.f32 %v586, %v750
      %v783 = vadd.f32 %v587, %v751
      %v784 = vadd.f32 %v588, %v752
      %v785 = vadd.f32 %v589, %v753
      %v786 = vadd.f32 %v590, %v754
      %v787 = vadd.f32 %v591, %v755
      %v788 = vadd.f32 %v592, %v756
      %v789 = vadd.f32 %v593, %v757
      %v790 = vadd.f32 %v594, %v758
      %v791 = vadd.f32 %v595, %v759
      %v792 = vadd.f32 %v596, %v760
      %v793 = vadd.f32 %v597, %v761
      %v794 = vadd.f32 %v598, %v762
      %v795 = vadd.f32 %v599, %v763
      %v796 = vadd.f32 %v600, %v764
      %v797 = vadd.f32 %v601, %v765
      %v798 = vadd.f32 %v602, %v766
      %v799 = vadd.f32 %v603, %v767
      %v800 = vadd.f32 %v604, %v768
      %801 = vset.pattern.permute.xlu0 2
      %802 = vperm.xlu0 %801, %v337
      %v803 = vpop.permute.xlu0 %802
      %805 = vset.pattern.permute.xlu0 2
      %806 = vperm.xlu0 %805, %v338
      %v807 = vpop.permute.xlu0 %806
      %809 = vset.pattern.permute.xlu0 2
      %810 = vperm.xlu0 %809, %v339
      %v811 = vpop.permute.xlu0 %810
      %813 = vset.pattern.permute.xlu0 2
      %814 = vperm.xlu0 %813, %v340
      %v815 = vpop.permute.xlu0 %814
      %817 = vset.pattern.permute.xlu0 2
      %818 = vperm.xlu0 %817, %v341
      %v819 = vpop.permute.xlu0 %818
      %821 = vset.pattern.permute.xlu0 2
      %822 = vperm.xlu0 %821, %v342
      %v823 = vpop.permute.xlu0 %822
      %825 = vset.pattern.permute.xlu0 2
      %826 = vperm.xlu0 %825, %v343
      %v827 = vpop.permute.xlu0 %826
      %829 = vset.pattern.permute.xlu0 2
      %830 = vperm.xlu0 %829, %v344
      %v831 = vpop.permute.xlu0 %830
      %833 = vset.pattern.permute.xlu0 2
      %834 = vperm.xlu0 %833, %v345
      %v835 = vpop.permute.xlu0 %834
      %837 = vset.pattern.permute.xlu0 2
      %838 = vperm.xlu0 %837, %v346
      %v839 = vpop.permute.xlu0 %838
      %841 = vset.pattern.permute.xlu0 2
      %842 = vperm.xlu0 %841, %v347
      %v843 = vpop.permute.xlu0 %842
      %845 = vset.pattern.permute.xlu0 2
      %846 = vperm.xlu0 %845, %v348
      %v847 = vpop.permute.xlu0 %846
      %849 = vset.pattern.permute.xlu0 2
      %850 = vperm.xlu0 %849, %v349
      %v851 = vpop.permute.xlu0 %850
      %853 = vset.pattern.permute.xlu0 2
      %854 = vperm.xlu0 %853, %v350
      %v855 = vpop.permute.xlu0 %854
      %857 = vset.pattern.permute.xlu0 2
      %858 = vperm.xlu0 %857, %v351
      %v859 = vpop.permute.xlu0 %858
      %861 = vset.pattern.permute.xlu0 2
      %862 = vperm.xlu0 %861, %v352
      %v863 = vpop.permute.xlu0 %862
      %865 = vset.pattern.permute.xlu0 2
      %866 = vperm.xlu0 %865, %v353
      %v867 = vpop.permute.xlu0 %866
      %869 = vset.pattern.permute.xlu0 2
      %870 = vperm.xlu0 %869, %v354
      %v871 = vpop.permute.xlu0 %870
      %873 = vset.pattern.permute.xlu0 2
      %874 = vperm.xlu0 %873, %v355
      %v875 = vpop.permute.xlu0 %874
      %877 = vset.pattern.permute.xlu0 2
      %878 = vperm.xlu0 %877, %v356
      %v879 = vpop.permute.xlu0 %878
      %881 = vset.pattern.permute.xlu0 2
      %882 = vperm.xlu0 %881, %v357
      %v883 = vpop.permute.xlu0 %882
      %885 = vset.pattern.permute.xlu0 2
      %886 = vperm.xlu0 %885, %v358
      %v887 = vpop.permute.xlu0 %886
      %889 = vset.pattern.permute.xlu0 2
      %890 = vperm.xlu0 %889, %v359
      %v891 = vpop.permute.xlu0 %890
      %893 = vset.pattern.permute.xlu0 2
      %894 = vperm.xlu0 %893, %v360
      %v895 = vpop.permute.xlu0 %894
      %897 = vset.pattern.permute.xlu0 2
      %898 = vperm.xlu0 %897, %v361
      %v899 = vpop.permute.xlu0 %898
      %901 = vset.pattern.permute.xlu0 2
      %902 = vperm.xlu0 %901, %v362
      %v903 = vpop.permute.xlu0 %902
      %905 = vset.pattern.permute.xlu0 2
      %906 = vperm.xlu0 %905, %v363
      %v907 = vpop.permute.xlu0 %906
      %909 = vset.pattern.permute.xlu0 2
      %910 = vperm.xlu0 %909, %v364
      %v911 = vpop.permute.xlu0 %910
      %913 = vset.pattern.permute.xlu0 2
      %914 = vperm.xlu0 %913, %v365
      %v915 = vpop.permute.xlu0 %914
      %917 = vset.pattern.permute.xlu0 2
      %918 = vperm.xlu0 %917, %v366
      %v919 = vpop.permute.xlu0 %918
      %921 = vset.pattern.permute.xlu0 2
      %922 = vperm.xlu0 %921, %v367
      %v923 = vpop.permute.xlu0 %922
      %925 = vset.pattern.permute.xlu0 2
      %926 = vperm.xlu0 %925, %v368
      %v927 = vpop.permute.xlu0 %926
      %v929 = vlaneseq
      %v930 = vshrl.u32 %v929, 7
      %v931 = vsub.s32 2, %v930
      %v932 = vrot.slane %v369, %v931
      %v933 = vmul.f32 %v803, %v932
      %v934 = vmul.f32 %v807, %v932
      %v935 = vmul.f32 %v811, %v932
      %v936 = vmul.f32 %v815, %v932
      %v937 = vmul.f32 %v819, %v932
      %v938 = vmul.f32 %v823, %v932
      %v939 = vmul.f32 %v827, %v932
      %v940 = vmul.f32 %v831, %v932
      %v941 = vmul.f32 %v835, %v932
      %v942 = vmul.f32 %v839, %v932
      %v943 = vmul.f32 %v843, %v932
      %v944 = vmul.f32 %v847, %v932
      %v945 = vmul.f32 %v851, %v932
      %v946 = vmul.f32 %v855, %v932
      %v947 = vmul.f32 %v859, %v932
      %v948 = vmul.f32 %v863, %v932
      %v949 = vmul.f32 %v867, %v932
      %v950 = vmul.f32 %v871, %v932
      %v951 = vmul.f32 %v875, %v932
      %v952 = vmul.f32 %v879, %v932
      %v953 = vmul.f32 %v883, %v932
      %v954 = vmul.f32 %v887, %v932
      %v955 = vmul.f32 %v891, %v932
      %v956 = vmul.f32 %v895, %v932
      %v957 = vmul.f32 %v899, %v932
      %v958 = vmul.f32 %v903, %v932
      %v959 = vmul.f32 %v907, %v932
      %v960 = vmul.f32 %v911, %v932
      %v961 = vmul.f32 %v915, %v932
      %v962 = vmul.f32 %v919, %v932
      %v963 = vmul.f32 %v923, %v932
      %v964 = vmul.f32 %v927, %v932
      %v965 = vadd.f32 %v769, %v933
      %v966 = vadd.f32 %v770, %v934
      %v967 = vadd.f32 %v771, %v935
      %v968 = vadd.f32 %v772, %v936
      %v969 = vadd.f32 %v773, %v937
      %v970 = vadd.f32 %v774, %v938
      %v971 = vadd.f32 %v775, %v939
      %v972 = vadd.f32 %v776, %v940
      %v973 = vadd.f32 %v777, %v941
      %v974 = vadd.f32 %v778, %v942
      %v975 = vadd.f32 %v779, %v943
      %v976 = vadd.f32 %v780, %v944
      %v977 = vadd.f32 %v781, %v945
      %v978 = vadd.f32 %v782, %v946
      %v979 = vadd.f32 %v783, %v947
      %v980 = vadd.f32 %v784, %v948
      %v981 = vadd.f32 %v785, %v949
      %v982 = vadd.f32 %v786, %v950
      %v983 = vadd.f32 %v787, %v951
      %v984 = vadd.f32 %v788, %v952
      %v985 = vadd.f32 %v789, %v953
      %v986 = vadd.f32 %v790, %v954
      %v987 = vadd.f32 %v791, %v955
      %v988 = vadd.f32 %v792, %v956
      %v989 = vadd.f32 %v793, %v957
      %v990 = vadd.f32 %v794, %v958
      %v991 = vadd.f32 %v795, %v959
      %v992 = vadd.f32 %v796, %v960
      %v993 = vadd.f32 %v797, %v961
      %v994 = vadd.f32 %v798, %v962
      %v995 = vadd.f32 %v799, %v963
      %v996 = vadd.f32 %v800, %v964
      %v997 = vmax.f32 %v965, 0.0
      %v998 = vmax.f32 %v966, 0.0
      %v999 = vmax.f32 %v967, 0.0
      %v1000 = vmax.f32 %v968, 0.0
      %v1001 = vmax.f32 %v969, 0.0
      %v1002 = vmax.f32 %v970, 0.0
      %v1003 = vmax.f32 %v971, 0.0
      %v1004 = vmax.f32 %v972, 0.0
      %v1005 = vmax.f32 %v973, 0.0
      %v1006 = vmax.f32 %v974, 0.0
      %v1007 = vmax.f32 %v975, 0.0
      %v1008 = vmax.f32 %v976, 0.0
      %v1009 = vmax.f32 %v977, 0.0
      %v1010 = vmax.f32 %v978, 0.0
      %v1011 = vmax.f32 %v979, 0.0
      %v1012 = vmax.f32 %v980, 0.0
      %v1013 = vmax.f32 %v981, 0.0
      %v1014 = vmax.f32 %v982, 0.0
      %v1015 = vmax.f32 %v983, 0.0
      %v1016 = vmax.f32 %v984, 0.0
      %v1017 = vmax.f32 %v985, 0.0
      %v1018 = vmax.f32 %v986, 0.0
      %v1019 = vmax.f32 %v987, 0.0
      %v1020 = vmax.f32 %v988, 0.0
      %v1021 = vmax.f32 %v989, 0.0
      %v1022 = vmax.f32 %v990, 0.0
      %v1023 = vmax.f32 %v991, 0.0
      %v1024 = vmax.f32 %v992, 0.0
      %v1025 = vmax.f32 %v993, 0.0
      %v1026 = vmax.f32 %v994, 0.0
      %v1027 = vmax.f32 %v995, 0.0
      %v1028 = vmax.f32 %v996, 0.0
      %v1029 = vpack.c.bf16 %v998, %v997
      %v1030 = vpack.c.bf16 %v1000, %v999
      %v1031 = vpack.c.bf16 %v1002, %v1001
      %v1032 = vpack.c.bf16 %v1004, %v1003
      %v1033 = vpack.c.bf16 %v1006, %v1005
      %v1034 = vpack.c.bf16 %v1008, %v1007
      %v1035 = vpack.c.bf16 %v1010, %v1009
      %v1036 = vpack.c.bf16 %v1012, %v1011
      %v1037 = vpack.c.bf16 %v1014, %v1013
      %v1038 = vpack.c.bf16 %v1016, %v1015
      %v1039 = vpack.c.bf16 %v1018, %v1017
      %v1040 = vpack.c.bf16 %v1020, %v1019
      %v1041 = vpack.c.bf16 %v1022, %v1021
      %v1042 = vpack.c.bf16 %v1024, %v1023
      %v1043 = vpack.c.bf16 %v1026, %v1025
      %v1044 = vpack.c.bf16 %v1028, %v1027
      %v1045 = vld [vmem:[%s3] sm:$0xf]
      %v1046 = vld [vmem:[%s3 + $0x4] sm:$0xf]
      %v1047 = vld [vmem:[%s3 + $0x8] sm:$0xf]
      %v1048 = vld [vmem:[%s3 + $0xc] sm:$0xf]
      %v1049 = vld [vmem:[%s3 + $0x10] sm:$0xf]
      %v1050 = vld [vmem:[%s3 + $0x14] sm:$0xf]
      %v1051 = vld [vmem:[%s3 + $0x18] sm:$0xf]
      %v1052 = vld [vmem:[%s3 + $0x1c] sm:$0xf]
      %v1053 = vld [vmem:[%s3 + $0x20] sm:$0xf]
      %v1054 = vld [vmem:[%s3 + $0x24] sm:$0xf]
      %v1055 = vld [vmem:[%s3 + $0x28] sm:$0xf]
      %v1056 = vld [vmem:[%s3 + $0x2c] sm:$0xf]
      %v1057 = vld [vmem:[%s3 + $0x30] sm:$0xf]
      %v1058 = vld [vmem:[%s3 + $0x34] sm:$0xf]
      %v1059 = vld [vmem:[%s3 + $0x38] sm:$0xf]
      %v1060 = vld [vmem:[%s3 + $0x3c] sm:$0xf]
      %v1061 = vld [vmem:[%s4] sm:$0x1]
      %v1063 = vlaneseq
      %v1064 = vshrl.u32 %v1063, 7
      %v1065 = vsub.s32 0, %v1064
      %v1066 = vrot.slane %v1061, %v1065
      %v1084 = vunpack.c.l.b16 %v1045
      %v1085 = vunpack.c.l.b16 %v1046
      %v1086 = vunpack.c.l.b16 %v1047
      %v1087 = vunpack.c.l.b16 %v1048
      %v1088 = vunpack.c.l.b16 %v1049
      %v1089 = vunpack.c.l.b16 %v1050
      %v1090 = vunpack.c.l.b16 %v1051
      %v1091 = vunpack.c.l.b16 %v1052
      %v1092 = vunpack.c.l.b16 %v1053
      %v1093 = vunpack.c.l.b16 %v1054
      %v1094 = vunpack.c.l.b16 %v1055
      %v1095 = vunpack.c.l.b16 %v1056
      %v1096 = vunpack.c.l.b16 %v1057
      %v1097 = vunpack.c.l.b16 %v1058
      %v1098 = vunpack.c.l.b16 %v1059
      %v1099 = vunpack.c.l.b16 %v1060
      %v1100 = vpack.c.b16 %v1085, %v1084
      %v1101 = vpack.c.b16 %v1087, %v1086
      %v1102 = vpack.c.b16 %v1089, %v1088
      %v1103 = vpack.c.b16 %v1091, %v1090
      %v1104 = vpack.c.b16 %v1093, %v1092
      %v1105 = vpack.c.b16 %v1095, %v1094
      %v1106 = vpack.c.b16 %v1097, %v1096
      %v1107 = vpack.c.b16 %v1099, %v1098
      %1116 = vmatprep.subr.bf16.mxu0 0
      %1117 = vmatpush1.bf16.msra.mxu0 %v1107
      %1118 = vmatprep.subr.bf16.mxu0 0
      %1119 = vmatpush1.bf16.msra.mxu0 %v1106
      %1120 = vmatprep.subr.bf16.mxu0 0
      %1121 = vmatpush1.bf16.msra.mxu0 %v1105
      %1122 = vmatprep.subr.bf16.mxu0 0
      %1123 = vmatpush1.bf16.msra.mxu0 %v1104
      %1124 = vmatprep.subr.bf16.mxu0 0
      %1125 = vmatpush1.bf16.msra.mxu0 %v1103
      %1126 = vmatprep.subr.bf16.mxu0 0
      %1127 = vmatpush1.bf16.msra.mxu0 %v1102
      %1128 = vmatprep.subr.bf16.mxu0 0
      %1129 = vmatpush1.bf16.msra.mxu0 %v1101
      %1130 = vmatprep.subr.bf16.mxu0 0
      %1131 = vmatpush1.bf16.msra.mxu0 %v1100
      %1132 = vmatprep.subr.bf16.mxu0 0
      %1133 = vmatpush2.bf16.msra.mxu0 0
      %1134 = vmatprep.subr.bf16.mxu0 0
      %1135 = vmatpush2.bf16.msra.mxu0 0
      %1136 = vmatprep.subr.bf16.mxu0 0
      %1137 = vmatpush2.bf16.msra.mxu0 0
      %1138 = vmatprep.subr.bf16.mxu0 0
      %1139 = vmatpush2.bf16.msra.mxu0 0
      %1140 = vmatprep.subr.bf16.mxu0 0
      %1141 = vmatpush2.bf16.msra.mxu0 0
      %1142 = vmatprep.subr.bf16.mxu0 0
      %1143 = vmatpush2.bf16.msra.mxu0 0
      %1144 = vmatprep.subr.bf16.mxu0 0
      %1145 = vmatpush2.bf16.msra.mxu0 0
      %1146 = vmatprep.subr.bf16.mxu0 0
      %1147 = vmatpush2.bf16.msra.mxu0 0
      %1148 = vmatprep.mubr.bf16.mxu0 0
      %1149 = vmatmul.mubr.bf16.gmra.mxu0 %v1029
      %v1150 = vpop.f32.mrf.mxu0
      %v1151 = vadd.f32 %v1066, %v1150
      %v1152 = vpop.f32.mrf.mxu0
      %v1153 = vpop.f32.mrf.mxu0
      %v1154 = vadd.f32 %v1066, %v1153
      %v1155 = vpop.f32.mrf.mxu0
      %1156 = vmatprep.mubr.bf16.mxu0 0
      %1157 = vmatmul.mubr.bf16.gmra.mxu0 %v1030
      %v1158 = vpop.f32.mrf.mxu0
      %v1159 = vadd.f32 %v1066, %v1158
      %v1160 = vpop.f32.mrf.mxu0
      %v1161 = vpop.f32.mrf.mxu0
      %v1162 = vadd.f32 %v1066, %v1161
      %v1163 = vpop.f32.mrf.mxu0
      %1164 = vmatprep.mubr.bf16.mxu0 0
      %1165 = vmatmul.mubr.bf16.gmra.mxu0 %v1031
      %v1166 = vpop.f32.mrf.mxu0
      %v1167 = vadd.f32 %v1066, %v1166
      %v1168 = vpop.f32.mrf.mxu0
      %v1169 = vpop.f32.mrf.mxu0
      %v1170 = vadd.f32 %v1066, %v1169
      %v1171 = vpop.f32.mrf.mxu0
      %1172 = vmatprep.mubr.bf16.mxu0 0
      %1173 = vmatmul.mubr.bf16.gmra.mxu0 %v1032
      %v1174 = vpop.f32.mrf.mxu0
      %v1175 = vadd.f32 %v1066, %v1174
      %v1176 = vpop.f32.mrf.mxu0
      %v1177 = vpop.f32.mrf.mxu0
      %v1178 = vadd.f32 %v1066, %v1177
      %v1179 = vpop.f32.mrf.mxu0
      %1180 = vmatprep.mubr.bf16.mxu0 0
      %1181 = vmatmul.mubr.bf16.gmra.mxu0 %v1033
      %v1182 = vpop.f32.mrf.mxu0
      %v1183 = vadd.f32 %v1066, %v1182
      %v1184 = vpop.f32.mrf.mxu0
      %v1185 = vpop.f32.mrf.mxu0
      %v1186 = vadd.f32 %v1066, %v1185
      %v1187 = vpop.f32.mrf.mxu0
      %1188 = vmatprep.mubr.bf16.mxu0 0
      %1189 = vmatmul.mubr.bf16.gmra.mxu0 %v1034
      %v1190 = vpop.f32.mrf.mxu0
      %v1191 = vadd.f32 %v1066, %v1190
      %v1192 = vpop.f32.mrf.mxu0
      %v1193 = vpop.f32.mrf.mxu0
      %v1194 = vadd.f32 %v1066, %v1193
      %v1195 = vpop.f32.mrf.mxu0
      %1196 = vmatprep.mubr.bf16.mxu0 0
      %1197 = vmatmul.mubr.bf16.gmra.mxu0 %v1035
      %v1198 = vpop.f32.mrf.mxu0
      %v1199 = vadd.f32 %v1066, %v1198
      %v1200 = vpop.f32.mrf.mxu0
      %v1201 = vpop.f32.mrf.mxu0
      %v1202 = vadd.f32 %v1066, %v1201
      %v1203 = vpop.f32.mrf.mxu0
      %1204 = vmatprep.mubr.bf16.mxu0 0
      %1205 = vmatmul.mubr.bf16.gmra.mxu0 %v1036
      %v1206 = vpop.f32.mrf.mxu0
      %v1207 = vadd.f32 %v1066, %v1206
      %v1208 = vpop.f32.mrf.mxu0
      %v1209 = vpop.f32.mrf.mxu0
      %v1210 = vadd.f32 %v1066, %v1209
      %v1211 = vpop.f32.mrf.mxu0
      %1212 = vmatprep.mubr.bf16.mxu0 0
      %1213 = vmatmul.mubr.bf16.gmra.mxu0 %v1037
      %v1214 = vpop.f32.mrf.mxu0
      %v1215 = vadd.f32 %v1066, %v1214
      %v1216 = vpop.f32.mrf.mxu0
      %v1217 = vpop.f32.mrf.mxu0
      %v1218 = vadd.f32 %v1066, %v1217
      %v1219 = vpop.f32.mrf.mxu0
      %1220 = vmatprep.mubr.bf16.mxu0 0
      %1221 = vmatmul.mubr.bf16.gmra.mxu0 %v1038
      %v1222 = vpop.f32.mrf.mxu0
      %v1223 = vadd.f32 %v1066, %v1222
      %v1224 = vpop.f32.mrf.mxu0
      %v1225 = vpop.f32.mrf.mxu0
      %v1226 = vadd.f32 %v1066, %v1225
      %v1227 = vpop.f32.mrf.mxu0
      %1228 = vmatprep.mubr.bf16.mxu0 0
      %1229 = vmatmul.mubr.bf16.gmra.mxu0 %v1039
      %v1230 = vpop.f32.mrf.mxu0
      %v1231 = vadd.f32 %v1066, %v1230
      %v1232 = vpop.f32.mrf.mxu0
      %v1233 = vpop.f32.mrf.mxu0
      %v1234 = vadd.f32 %v1066, %v1233
      %v1235 = vpop.f32.mrf.mxu0
      %1236 = vmatprep.mubr.bf16.mxu0 0
      %1237 = vmatmul.mubr.bf16.gmra.mxu0 %v1040
      %v1238 = vpop.f32.mrf.mxu0
      %v1239 = vadd.f32 %v1066, %v1238
      %v1240 = vpop.f32.mrf.mxu0
      %v1241 = vpop.f32.mrf.mxu0
      %v1242 = vadd.f32 %v1066, %v1241
      %v1243 = vpop.f32.mrf.mxu0
      %1244 = vmatprep.mubr.bf16.mxu0 0
      %1245 = vmatmul.mubr.bf16.gmra.mxu0 %v1041
      %v1246 = vpop.f32.mrf.mxu0
      %v1247 = vadd.f32 %v1066, %v1246
      %v1248 = vpop.f32.mrf.mxu0
      %v1249 = vpop.f32.mrf.mxu0
      %v1250 = vadd.f32 %v1066, %v1249
      %v1251 = vpop.f32.mrf.mxu0
      %1252 = vmatprep.mubr.bf16.mxu0 0
      %1253 = vmatmul.mubr.bf16.gmra.mxu0 %v1042
      %v1254 = vpop.f32.mrf.mxu0
      %v1255 = vadd.f32 %v1066, %v1254
      %v1256 = vpop.f32.mrf.mxu0
      %v1257 = vpop.f32.mrf.mxu0
      %v1258 = vadd.f32 %v1066, %v1257
      %v1259 = vpop.f32.mrf.mxu0
      %1260 = vmatprep.mubr.bf16.mxu0 0
      %1261 = vmatmul.mubr.bf16.gmra.mxu0 %v1043
      %v1262 = vpop.f32.mrf.mxu0
      %v1263 = vadd.f32 %v1066, %v1262
      %v1264 = vpop.f32.mrf.mxu0
      %v1265 = vpop.f32.mrf.mxu0
      %v1266 = vadd.f32 %v1066, %v1265
      %v1267 = vpop.f32.mrf.mxu0
      %1268 = vmatprep.mubr.bf16.mxu0 0
      %1269 = vmatmul.mubr.bf16.gmra.mxu0 %v1044
      %v1270 = vpop.f32.mrf.mxu0
      %v1271 = vadd.f32 %v1066, %v1270
      %v1272 = vpop.f32.mrf.mxu0
      %v1273 = vpop.f32.mrf.mxu0
      %v1274 = vadd.f32 %v1066, %v1273
      %v1275 = vpop.f32.mrf.mxu0
      %1276 = vdwg.mxu0
      %v1277 = vmax.f32 %v1151, 0.0
      %v1278 = vmax.f32 %v1154, 0.0
      %v1279 = vmax.f32 %v1159, 0.0
      %v1280 = vmax.f32 %v1162, 0.0
      %v1281 = vmax.f32 %v1167, 0.0
      %v1282 = vmax.f32 %v1170, 0.0
      %v1283 = vmax.f32 %v1175, 0.0
      %v1284 = vmax.f32 %v1178, 0.0
      %v1285 = vmax.f32 %v1183, 0.0
      %v1286 = vmax.f32 %v1186, 0.0
      %v1287 = vmax.f32 %v1191, 0.0
      %v1288 = vmax.f32 %v1194, 0.0
      %v1289 = vmax.f32 %v1199, 0.0
      %v1290 = vmax.f32 %v1202, 0.0
      %v1291 = vmax.f32 %v1207, 0.0
      %v1292 = vmax.f32 %v1210, 0.0
      %v1293 = vmax.f32 %v1215, 0.0
      %v1294 = vmax.f32 %v1218, 0.0
      %v1295 = vmax.f32 %v1223, 0.0
      %v1296 = vmax.f32 %v1226, 0.0
      %v1297 = vmax.f32 %v1231, 0.0
      %v1298 = vmax.f32 %v1234, 0.0
      %v1299 = vmax.f32 %v1239, 0.0
      %v1300 = vmax.f32 %v1242, 0.0
      %v1301 = vmax.f32 %v1247, 0.0
      %v1302 = vmax.f32 %v1250, 0.0
      %v1303 = vmax.f32 %v1255, 0.0
      %v1304 = vmax.f32 %v1258, 0.0
      %v1305 = vmax.f32 %v1263, 0.0
      %v1306 = vmax.f32 %v1266, 0.0
      %v1307 = vmax.f32 %v1271, 0.0
      %v1308 = vmax.f32 %v1274, 0.0
      %v1309 = vpack.c.bf16 %v1278, %v1277
      %v1310 = vpack.c.bf16 %v1280, %v1279
      %v1311 = vpack.c.bf16 %v1282, %v1281
      %v1312 = vpack.c.bf16 %v1284, %v1283
      %v1313 = vpack.c.bf16 %v1286, %v1285
      %v1314 = vpack.c.bf16 %v1288, %v1287
      %v1315 = vpack.c.bf16 %v1290, %v1289
      %v1316 = vpack.c.bf16 %v1292, %v1291
      %v1317 = vpack.c.bf16 %v1294, %v1293
      %v1318 = vpack.c.bf16 %v1296, %v1295
      %v1319 = vpack.c.bf16 %v1298, %v1297
      %v1320 = vpack.c.bf16 %v1300, %v1299
      %v1321 = vpack.c.bf16 %v1302, %v1301
      %v1322 = vpack.c.bf16 %v1304, %v1303
      %v1323 = vpack.c.bf16 %v1306, %v1305
      %v1324 = vpack.c.bf16 %v1308, %v1307
      %v1325 = vld [vmem:[%s5] sm:$0xf]
      %v1326 = vld [vmem:[%s5 + $0x4] sm:$0xf]
      %v1327 = vld [vmem:[%s5 + $0x8] sm:$0xf]
      %v1328 = vld [vmem:[%s5 + $0xc] sm:$0xf]
      %v1329 = vld [vmem:[%s5 + $0x10] sm:$0xf]
      %v1330 = vld [vmem:[%s5 + $0x14] sm:$0xf]
      %v1331 = vld [vmem:[%s5 + $0x18] sm:$0xf]
      %v1332 = vld [vmem:[%s5 + $0x1c] sm:$0xf]
      %v1333 = vld [vmem:[%s5 + $0x20] sm:$0xf]
      %v1334 = vld [vmem:[%s5 + $0x24] sm:$0xf]
      %v1335 = vld [vmem:[%s5 + $0x28] sm:$0xf]
      %v1336 = vld [vmem:[%s5 + $0x2c] sm:$0xf]
      %v1337 = vld [vmem:[%s5 + $0x30] sm:$0xf]
      %v1338 = vld [vmem:[%s5 + $0x34] sm:$0xf]
      %v1339 = vld [vmem:[%s5 + $0x38] sm:$0xf]
      %v1340 = vld [vmem:[%s5 + $0x3c] sm:$0xf]
      %v1341 = vld [vmem:[%s6] sm:$0x1]
      %v1343 = vlaneseq
      %v1344 = vshrl.u32 %v1343, 7
      %v1345 = vsub.s32 0, %v1344
      %v1346 = vrot.slane %v1341, %v1345
      %v1364 = vunpack.c.l.b16 %v1325
      %v1365 = vunpack.c.l.b16 %v1326
      %v1366 = vunpack.c.l.b16 %v1327
      %v1367 = vunpack.c.l.b16 %v1328
      %v1368 = vunpack.c.l.b16 %v1329
      %v1369 = vunpack.c.l.b16 %v1330
      %v1370 = vunpack.c.l.b16 %v1331
      %v1371 = vunpack.c.l.b16 %v1332
      %v1372 = vunpack.c.l.b16 %v1333
      %v1373 = vunpack.c.l.b16 %v1334
      %v1374 = vunpack.c.l.b16 %v1335
      %v1375 = vunpack.c.l.b16 %v1336
      %v1376 = vunpack.c.l.b16 %v1337
      %v1377 = vunpack.c.l.b16 %v1338
      %v1378 = vunpack.c.l.b16 %v1339
      %v1379 = vunpack.c.l.b16 %v1340
      %v1380 = vpack.c.b16 %v1365, %v1364
      %v1381 = vpack.c.b16 %v1367, %v1366
      %v1382 = vpack.c.b16 %v1369, %v1368
      %v1383 = vpack.c.b16 %v1371, %v1370
      %v1384 = vpack.c.b16 %v1373, %v1372
      %v1385 = vpack.c.b16 %v1375, %v1374
      %v1386 = vpack.c.b16 %v1377, %v1376
      %v1387 = vpack.c.b16 %v1379, %v1378
      %1396 = vmatprep.subr.bf16.mxu0 0
      %1397 = vmatpush1.bf16.msra.mxu0 %v1387
      %1398 = vmatprep.subr.bf16.mxu0 0
      %1399 = vmatpush1.bf16.msra.mxu0 %v1386
      %1400 = vmatprep.subr.bf16.mxu0 0
      %1401 = vmatpush1.bf16.msra.mxu0 %v1385
      %1402 = vmatprep.subr.bf16.mxu0 0
      %1403 = vmatpush1.bf16.msra.mxu0 %v1384
      %1404 = vmatprep.subr.bf16.mxu0 0
      %1405 = vmatpush1.bf16.msra.mxu0 %v1383
      %1406 = vmatprep.subr.bf16.mxu0 0
      %1407 = vmatpush1.bf16.msra.mxu0 %v1382
      %1408 = vmatprep.subr.bf16.mxu0 0
      %1409 = vmatpush1.bf16.msra.mxu0 %v1381
      %1410 = vmatprep.subr.bf16.mxu0 0
      %1411 = vmatpush1.bf16.msra.mxu0 %v1380
      %1412 = vmatprep.subr.bf16.mxu0 0
      %1413 = vmatpush2.bf16.msra.mxu0 0
      %1414 = vmatprep.subr.bf16.mxu0 0
      %1415 = vmatpush2.bf16.msra.mxu0 0
      %1416 = vmatprep.subr.bf16.mxu0 0
      %1417 = vmatpush2.bf16.msra.mxu0 0
      %1418 = vmatprep.subr.bf16.mxu0 0
      %1419 = vmatpush2.bf16.msra.mxu0 0
      %1420 = vmatprep.subr.bf16.mxu0 0
      %1421 = vmatpush2.bf16.msra.mxu0 0
      %1422 = vmatprep.subr.bf16.mxu0 0
      %1423 = vmatpush2.bf16.msra.mxu0 0
      %1424 = vmatprep.subr.bf16.mxu0 0
      %1425 = vmatpush2.bf16.msra.mxu0 0
      %1426 = vmatprep.subr.bf16.mxu0 0
      %1427 = vmatpush2.bf16.msra.mxu0 0
      %1428 = vmatprep.mubr.bf16.mxu0 0
      %1429 = vmatmul.mubr.bf16.gmra.mxu0 %v1309
      %v1430 = vpop.f32.mrf.mxu0
      %v1431 = vadd.f32 %v1346, %v1430
      %v1432 = vpop.f32.mrf.mxu0
      %v1433 = vpop.f32.mrf.mxu0
      %v1434 = vadd.f32 %v1346, %v1433
      %v1435 = vpop.f32.mrf.mxu0
      %1436 = vmatprep.mubr.bf16.mxu0 0
      %1437 = vmatmul.mubr.bf16.gmra.mxu0 %v1310
      %v1438 = vpop.f32.mrf.mxu0
      %v1439 = vadd.f32 %v1346, %v1438
      %v1440 = vpop.f32.mrf.mxu0
      %v1441 = vpop.f32.mrf.mxu0
      %v1442 = vadd.f32 %v1346, %v1441
      %v1443 = vpop.f32.mrf.mxu0
      %1444 = vmatprep.mubr.bf16.mxu0 0
      %1445 = vmatmul.mubr.bf16.gmra.mxu0 %v1311
      %v1446 = vpop.f32.mrf.mxu0
      %v1447 = vadd.f32 %v1346, %v1446
      %v1448 = vpop.f32.mrf.mxu0
      %v1449 = vpop.f32.mrf.mxu0
      %v1450 = vadd.f32 %v1346, %v1449
      %v1451 = vpop.f32.mrf.mxu0
      %1452 = vmatprep.mubr.bf16.mxu0 0
      %1453 = vmatmul.mubr.bf16.gmra.mxu0 %v1312
      %v1454 = vpop.f32.mrf.mxu0
      %v1455 = vadd.f32 %v1346, %v1454
      %v1456 = vpop.f32.mrf.mxu0
      %v1457 = vpop.f32.mrf.mxu0
      %v1458 = vadd.f32 %v1346, %v1457
      %v1459 = vpop.f32.mrf.mxu0
      %1460 = vmatprep.mubr.bf16.mxu0 0
      %1461 = vmatmul.mubr.bf16.gmra.mxu0 %v1313
      %v1462 = vpop.f32.mrf.mxu0
      %v1463 = vadd.f32 %v1346, %v1462
      %v1464 = vpop.f32.mrf.mxu0
      %v1465 = vpop.f32.mrf.mxu0
      %v1466 = vadd.f32 %v1346, %v1465
      %v1467 = vpop.f32.mrf.mxu0
      %1468 = vmatprep.mubr.bf16.mxu0 0
      %1469 = vmatmul.mubr.bf16.gmra.mxu0 %v1314
      %v1470 = vpop.f32.mrf.mxu0
      %v1471 = vadd.f32 %v1346, %v1470
      %v1472 = vpop.f32.mrf.mxu0
      %v1473 = vpop.f32.mrf.mxu0
      %v1474 = vadd.f32 %v1346, %v1473
      %v1475 = vpop.f32.mrf.mxu0
      %1476 = vmatprep.mubr.bf16.mxu0 0
      %1477 = vmatmul.mubr.bf16.gmra.mxu0 %v1315
      %v1478 = vpop.f32.mrf.mxu0
      %v1479 = vadd.f32 %v1346, %v1478
      %v1480 = vpop.f32.mrf.mxu0
      %v1481 = vpop.f32.mrf.mxu0
      %v1482 = vadd.f32 %v1346, %v1481
      %v1483 = vpop.f32.mrf.mxu0
      %1484 = vmatprep.mubr.bf16.mxu0 0
      %1485 = vmatmul.mubr.bf16.gmra.mxu0 %v1316
      %v1486 = vpop.f32.mrf.mxu0
      %v1487 = vadd.f32 %v1346, %v1486
      %v1488 = vpop.f32.mrf.mxu0
      %v1489 = vpop.f32.mrf.mxu0
      %v1490 = vadd.f32 %v1346, %v1489
      %v1491 = vpop.f32.mrf.mxu0
      %1492 = vmatprep.mubr.bf16.mxu0 0
      %1493 = vmatmul.mubr.bf16.gmra.mxu0 %v1317
      %v1494 = vpop.f32.mrf.mxu0
      %v1495 = vadd.f32 %v1346, %v1494
      %v1496 = vpop.f32.mrf.mxu0
      %v1497 = vpop.f32.mrf.mxu0
      %v1498 = vadd.f32 %v1346, %v1497
      %v1499 = vpop.f32.mrf.mxu0
      %1500 = vmatprep.mubr.bf16.mxu0 0
      %1501 = vmatmul.mubr.bf16.gmra.mxu0 %v1318
      %v1502 = vpop.f32.mrf.mxu0
      %v1503 = vadd.f32 %v1346, %v1502
      %v1504 = vpop.f32.mrf.mxu0
      %v1505 = vpop.f32.mrf.mxu0
      %v1506 = vadd.f32 %v1346, %v1505
      %v1507 = vpop.f32.mrf.mxu0
      %1508 = vmatprep.mubr.bf16.mxu0 0
      %1509 = vmatmul.mubr.bf16.gmra.mxu0 %v1319
      %v1510 = vpop.f32.mrf.mxu0
      %v1511 = vadd.f32 %v1346, %v1510
      %v1512 = vpop.f32.mrf.mxu0
      %v1513 = vpop.f32.mrf.mxu0
      %v1514 = vadd.f32 %v1346, %v1513
      %v1515 = vpop.f32.mrf.mxu0
      %1516 = vmatprep.mubr.bf16.mxu0 0
      %1517 = vmatmul.mubr.bf16.gmra.mxu0 %v1320
      %v1518 = vpop.f32.mrf.mxu0
      %v1519 = vadd.f32 %v1346, %v1518
      %v1520 = vpop.f32.mrf.mxu0
      %v1521 = vpop.f32.mrf.mxu0
      %v1522 = vadd.f32 %v1346, %v1521
      %v1523 = vpop.f32.mrf.mxu0
      %1524 = vmatprep.mubr.bf16.mxu0 0
      %1525 = vmatmul.mubr.bf16.gmra.mxu0 %v1321
      %v1526 = vpop.f32.mrf.mxu0
      %v1527 = vadd.f32 %v1346, %v1526
      %v1528 = vpop.f32.mrf.mxu0
      %v1529 = vpop.f32.mrf.mxu0
      %v1530 = vadd.f32 %v1346, %v1529
      %v1531 = vpop.f32.mrf.mxu0
      %1532 = vmatprep.mubr.bf16.mxu0 0
      %1533 = vmatmul.mubr.bf16.gmra.mxu0 %v1322
      %v1534 = vpop.f32.mrf.mxu0
      %v1535 = vadd.f32 %v1346, %v1534
      %v1536 = vpop.f32.mrf.mxu0
      %v1537 = vpop.f32.mrf.mxu0
      %v1538 = vadd.f32 %v1346, %v1537
      %v1539 = vpop.f32.mrf.mxu0
      %1540 = vmatprep.mubr.bf16.mxu0 0
      %1541 = vmatmul.mubr.bf16.gmra.mxu0 %v1323
      %v1542 = vpop.f32.mrf.mxu0
      %v1543 = vadd.f32 %v1346, %v1542
      %v1544 = vpop.f32.mrf.mxu0
      %v1545 = vpop.f32.mrf.mxu0
      %v1546 = vadd.f32 %v1346, %v1545
      %v1547 = vpop.f32.mrf.mxu0
      %1548 = vmatprep.mubr.bf16.mxu0 0
      %1549 = vmatmul.mubr.bf16.gmra.mxu0 %v1324
      %v1550 = vpop.f32.mrf.mxu0
      %v1551 = vadd.f32 %v1346, %v1550
      %v1552 = vpop.f32.mrf.mxu0
      %v1553 = vpop.f32.mrf.mxu0
      %v1554 = vadd.f32 %v1346, %v1553
      %v1555 = vpop.f32.mrf.mxu0
      %1556 = vdwg.mxu0
      %v1557 = vmax.f32 %v1431, 0.0
      %v1558 = vmax.f32 %v1434, 0.0
      %v1559 = vmax.f32 %v1439, 0.0
      %v1560 = vmax.f32 %v1442, 0.0
      %v1561 = vmax.f32 %v1447, 0.0
      %v1562 = vmax.f32 %v1450, 0.0
      %v1563 = vmax.f32 %v1455, 0.0
      %v1564 = vmax.f32 %v1458, 0.0
      %v1565 = vmax.f32 %v1463, 0.0
      %v1566 = vmax.f32 %v1466, 0.0
      %v1567 = vmax.f32 %v1471, 0.0
      %v1568 = vmax.f32 %v1474, 0.0
      %v1569 = vmax.f32 %v1479, 0.0
      %v1570 = vmax.f32 %v1482, 0.0
      %v1571 = vmax.f32 %v1487, 0.0
      %v1572 = vmax.f32 %v1490, 0.0
      %v1573 = vmax.f32 %v1495, 0.0
      %v1574 = vmax.f32 %v1498, 0.0
      %v1575 = vmax.f32 %v1503, 0.0
      %v1576 = vmax.f32 %v1506, 0.0
      %v1577 = vmax.f32 %v1511, 0.0
      %v1578 = vmax.f32 %v1514, 0.0
      %v1579 = vmax.f32 %v1519, 0.0
      %v1580 = vmax.f32 %v1522, 0.0
      %v1581 = vmax.f32 %v1527, 0.0
      %v1582 = vmax.f32 %v1530, 0.0
      %v1583 = vmax.f32 %v1535, 0.0
      %v1584 = vmax.f32 %v1538, 0.0
      %v1585 = vmax.f32 %v1543, 0.0
      %v1586 = vmax.f32 %v1546, 0.0
      %v1587 = vmax.f32 %v1551, 0.0
      %v1588 = vmax.f32 %v1554, 0.0
      %v1589 = vpack.c.bf16 %v1558, %v1557
      %v1590 = vpack.c.bf16 %v1560, %v1559
      %v1591 = vpack.c.bf16 %v1562, %v1561
      %v1592 = vpack.c.bf16 %v1564, %v1563
      %v1593 = vpack.c.bf16 %v1566, %v1565
      %v1594 = vpack.c.bf16 %v1568, %v1567
      %v1595 = vpack.c.bf16 %v1570, %v1569
      %v1596 = vpack.c.bf16 %v1572, %v1571
      %v1597 = vpack.c.bf16 %v1574, %v1573
      %v1598 = vpack.c.bf16 %v1576, %v1575
      %v1599 = vpack.c.bf16 %v1578, %v1577
      %v1600 = vpack.c.bf16 %v1580, %v1579
      %v1601 = vpack.c.bf16 %v1582, %v1581
      %v1602 = vpack.c.bf16 %v1584, %v1583
      %v1603 = vpack.c.bf16 %v1586, %v1585
      %v1604 = vpack.c.bf16 %v1588, %v1587
      %v1605 = vld [vmem:[%s7] sm:$0xf]
      %v1606 = vld [vmem:[%s7 + $0x4] sm:$0xf]
      %v1607 = vld [vmem:[%s7 + $0x8] sm:$0xf]
      %v1608 = vld [vmem:[%s7 + $0xc] sm:$0xf]
      %v1609 = vld [vmem:[%s7 + $0x10] sm:$0xf]
      %v1610 = vld [vmem:[%s7 + $0x14] sm:$0xf]
      %v1611 = vld [vmem:[%s7 + $0x18] sm:$0xf]
      %v1612 = vld [vmem:[%s7 + $0x1c] sm:$0xf]
      %v1613 = vld [vmem:[%s7 + $0x20] sm:$0xf]
      %v1614 = vld [vmem:[%s7 + $0x24] sm:$0xf]
      %v1615 = vld [vmem:[%s7 + $0x28] sm:$0xf]
      %v1616 = vld [vmem:[%s7 + $0x2c] sm:$0xf]
      %v1617 = vld [vmem:[%s7 + $0x30] sm:$0xf]
      %v1618 = vld [vmem:[%s7 + $0x34] sm:$0xf]
      %v1619 = vld [vmem:[%s7 + $0x38] sm:$0xf]
      %v1620 = vld [vmem:[%s7 + $0x3c] sm:$0xf]
      %v1621 = vld [vmem:[%s8] sm:$0x1]
      %v1623 = vlaneseq
      %v1624 = vshrl.u32 %v1623, 7
      %v1625 = vsub.s32 0, %v1624
      %v1626 = vrot.slane %v1621, %v1625
      %v1644 = vunpack.c.l.b16 %v1605
      %v1645 = vunpack.c.l.b16 %v1606
      %v1646 = vunpack.c.l.b16 %v1607
      %v1647 = vunpack.c.l.b16 %v1608
      %v1648 = vunpack.c.l.b16 %v1609
      %v1649 = vunpack.c.l.b16 %v1610
      %v1650 = vunpack.c.l.b16 %v1611
      %v1651 = vunpack.c.l.b16 %v1612
      %v1652 = vunpack.c.l.b16 %v1613
      %v1653 = vunpack.c.l.b16 %v1614
      %v1654 = vunpack.c.l.b16 %v1615
      %v1655 = vunpack.c.l.b16 %v1616
      %v1656 = vunpack.c.l.b16 %v1617
      %v1657 = vunpack.c.l.b16 %v1618
      %v1658 = vunpack.c.l.b16 %v1619
      %v1659 = vunpack.c.l.b16 %v1620
      %v1660 = vpack.c.b16 %v1645, %v1644
      %v1661 = vpack.c.b16 %v1647, %v1646
      %v1662 = vpack.c.b16 %v1649, %v1648
      %v1663 = vpack.c.b16 %v1651, %v1650
      %v1664 = vpack.c.b16 %v1653, %v1652
      %v1665 = vpack.c.b16 %v1655, %v1654
      %v1666 = vpack.c.b16 %v1657, %v1656
      %v1667 = vpack.c.b16 %v1659, %v1658
      %1676 = vmatprep.subr.bf16.mxu0 0
      %1677 = vmatpush1.bf16.msra.mxu0 %v1667
      %1678 = vmatprep.subr.bf16.mxu0 0
      %1679 = vmatpush1.bf16.msra.mxu0 %v1666
      %1680 = vmatprep.subr.bf16.mxu0 0
      %1681 = vmatpush1.bf16.msra.mxu0 %v1665
      %1682 = vmatprep.subr.bf16.mxu0 0
      %1683 = vmatpush1.bf16.msra.mxu0 %v1664
      %1684 = vmatprep.subr.bf16.mxu0 0
      %1685 = vmatpush1.bf16.msra.mxu0 %v1663
      %1686 = vmatprep.subr.bf16.mxu0 0
      %1687 = vmatpush1.bf16.msra.mxu0 %v1662
      %1688 = vmatprep.subr.bf16.mxu0 0
      %1689 = vmatpush1.bf16.msra.mxu0 %v1661
      %1690 = vmatprep.subr.bf16.mxu0 0
      %1691 = vmatpush1.bf16.msra.mxu0 %v1660
      %1692 = vmatprep.subr.bf16.mxu0 0
      %1693 = vmatpush2.bf16.msra.mxu0 0
      %1694 = vmatprep.subr.bf16.mxu0 0
      %1695 = vmatpush2.bf16.msra.mxu0 0
      %1696 = vmatprep.subr.bf16.mxu0 0
      %1697 = vmatpush2.bf16.msra.mxu0 0
      %1698 = vmatprep.subr.bf16.mxu0 0
      %1699 = vmatpush2.bf16.msra.mxu0 0
      %1700 = vmatprep.subr.bf16.mxu0 0
      %1701 = vmatpush2.bf16.msra.mxu0 0
      %1702 = vmatprep.subr.bf16.mxu0 0
      %1703 = vmatpush2.bf16.msra.mxu0 0
      %1704 = vmatprep.subr.bf16.mxu0 0
      %1705 = vmatpush2.bf16.msra.mxu0 0
      %1706 = vmatprep.subr.bf16.mxu0 0
      %1707 = vmatpush2.bf16.msra.mxu0 0
      %1708 = vmatprep.mubr.bf16.mxu0 0
      %1709 = vmatmul.mubr.bf16.gmra.mxu0 %v1589
      %v1710 = vpop.f32.mrf.mxu0
      %v1711 = vadd.f32 %v1626, %v1710
      %v1712 = vpop.f32.mrf.mxu0
      %v1713 = vpop.f32.mrf.mxu0
      %v1714 = vadd.f32 %v1626, %v1713
      %v1715 = vpop.f32.mrf.mxu0
      %1716 = vmatprep.mubr.bf16.mxu0 0
      %1717 = vmatmul.mubr.bf16.gmra.mxu0 %v1590
      %v1718 = vpop.f32.mrf.mxu0
      %v1719 = vadd.f32 %v1626, %v1718
      %v1720 = vpop.f32.mrf.mxu0
      %v1721 = vpop.f32.mrf.mxu0
      %v1722 = vadd.f32 %v1626, %v1721
      %v1723 = vpop.f32.mrf.mxu0
      %1724 = vmatprep.mubr.bf16.mxu0 0
      %1725 = vmatmul.mubr.bf16.gmra.mxu0 %v1591
      %v1726 = vpop.f32.mrf.mxu0
      %v1727 = vadd.f32 %v1626, %v1726
      %v1728 = vpop.f32.mrf.mxu0
      %v1729 = vpop.f32.mrf.mxu0
      %v1730 = vadd.f32 %v1626, %v1729
      %v1731 = vpop.f32.mrf.mxu0
      %1732 = vmatprep.mubr.bf16.mxu0 0
      %1733 = vmatmul.mubr.bf16.gmra.mxu0 %v1592
      %v1734 = vpop.f32.mrf.mxu0
      %v1735 = vadd.f32 %v1626, %v1734
      %v1736 = vpop.f32.mrf.mxu0
      %v1737 = vpop.f32.mrf.mxu0
      %v1738 = vadd.f32 %v1626, %v1737
      %v1739 = vpop.f32.mrf.mxu0
      %1740 = vmatprep.mubr.bf16.mxu0 0
      %1741 = vmatmul.mubr.bf16.gmra.mxu0 %v1593
      %v1742 = vpop.f32.mrf.mxu0
      %v1743 = vadd.f32 %v1626, %v1742
      %v1744 = vpop.f32.mrf.mxu0
      %v1745 = vpop.f32.mrf.mxu0
      %v1746 = vadd.f32 %v1626, %v1745
      %v1747 = vpop.f32.mrf.mxu0
      %1748 = vmatprep.mubr.bf16.mxu0 0
      %1749 = vmatmul.mubr.bf16.gmra.mxu0 %v1594
      %v1750 = vpop.f32.mrf.mxu0
      %v1751 = vadd.f32 %v1626, %v1750
      %v1752 = vpop.f32.mrf.mxu0
      %v1753 = vpop.f32.mrf.mxu0
      %v1754 = vadd.f32 %v1626, %v1753
      %v1755 = vpop.f32.mrf.mxu0
      %1756 = vmatprep.mubr.bf16.mxu0 0
      %1757 = vmatmul.mubr.bf16.gmra.mxu0 %v1595
      %v1758 = vpop.f32.mrf.mxu0
      %v1759 = vadd.f32 %v1626, %v1758
      %v1760 = vpop.f32.mrf.mxu0
      %v1761 = vpop.f32.mrf.mxu0
      %v1762 = vadd.f32 %v1626, %v1761
      %v1763 = vpop.f32.mrf.mxu0
      %1764 = vmatprep.mubr.bf16.mxu0 0
      %1765 = vmatmul.mubr.bf16.gmra.mxu0 %v1596
      %v1766 = vpop.f32.mrf.mxu0
      %v1767 = vadd.f32 %v1626, %v1766
      %v1768 = vpop.f32.mrf.mxu0
      %v1769 = vpop.f32.mrf.mxu0
      %v1770 = vadd.f32 %v1626, %v1769
      %v1771 = vpop.f32.mrf.mxu0
      %1772 = vmatprep.mubr.bf16.mxu0 0
      %1773 = vmatmul.mubr.bf16.gmra.mxu0 %v1597
      %v1774 = vpop.f32.mrf.mxu0
      %v1775 = vadd.f32 %v1626, %v1774
      %v1776 = vpop.f32.mrf.mxu0
      %v1777 = vpop.f32.mrf.mxu0
      %v1778 = vadd.f32 %v1626, %v1777
      %v1779 = vpop.f32.mrf.mxu0
      %1780 = vmatprep.mubr.bf16.mxu0 0
      %1781 = vmatmul.mubr.bf16.gmra.mxu0 %v1598
      %v1782 = vpop.f32.mrf.mxu0
      %v1783 = vadd.f32 %v1626, %v1782
      %v1784 = vpop.f32.mrf.mxu0
      %v1785 = vpop.f32.mrf.mxu0
      %v1786 = vadd.f32 %v1626, %v1785
      %v1787 = vpop.f32.mrf.mxu0
      %1788 = vmatprep.mubr.bf16.mxu0 0
      %1789 = vmatmul.mubr.bf16.gmra.mxu0 %v1599
      %v1790 = vpop.f32.mrf.mxu0
      %v1791 = vadd.f32 %v1626, %v1790
      %v1792 = vpop.f32.mrf.mxu0
      %v1793 = vpop.f32.mrf.mxu0
      %v1794 = vadd.f32 %v1626, %v1793
      %v1795 = vpop.f32.mrf.mxu0
      %1796 = vmatprep.mubr.bf16.mxu0 0
      %1797 = vmatmul.mubr.bf16.gmra.mxu0 %v1600
      %v1798 = vpop.f32.mrf.mxu0
      %v1799 = vadd.f32 %v1626, %v1798
      %v1800 = vpop.f32.mrf.mxu0
      %v1801 = vpop.f32.mrf.mxu0
      %v1802 = vadd.f32 %v1626, %v1801
      %v1803 = vpop.f32.mrf.mxu0
      %1804 = vmatprep.mubr.bf16.mxu0 0
      %1805 = vmatmul.mubr.bf16.gmra.mxu0 %v1601
      %v1806 = vpop.f32.mrf.mxu0
      %v1807 = vadd.f32 %v1626, %v1806
      %v1808 = vpop.f32.mrf.mxu0
      %v1809 = vpop.f32.mrf.mxu0
      %v1810 = vadd.f32 %v1626, %v1809
      %v1811 = vpop.f32.mrf.mxu0
      %1812 = vmatprep.mubr.bf16.mxu0 0
      %1813 = vmatmul.mubr.bf16.gmra.mxu0 %v1602
      %v1814 = vpop.f32.mrf.mxu0
      %v1815 = vadd.f32 %v1626, %v1814
      %v1816 = vpop.f32.mrf.mxu0
      %v1817 = vpop.f32.mrf.mxu0
      %v1818 = vadd.f32 %v1626, %v1817
      %v1819 = vpop.f32.mrf.mxu0
      %1820 = vmatprep.mubr.bf16.mxu0 0
      %1821 = vmatmul.mubr.bf16.gmra.mxu0 %v1603
      %v1822 = vpop.f32.mrf.mxu0
      %v1823 = vadd.f32 %v1626, %v1822
      %v1824 = vpop.f32.mrf.mxu0
      %v1825 = vpop.f32.mrf.mxu0
      %v1826 = vadd.f32 %v1626, %v1825
      %v1827 = vpop.f32.mrf.mxu0
      %1828 = vmatprep.mubr.bf16.mxu0 0
      %1829 = vmatmul.mubr.bf16.gmra.mxu0 %v1604
      %v1830 = vpop.f32.mrf.mxu0
      %v1831 = vadd.f32 %v1626, %v1830
      %v1832 = vpop.f32.mrf.mxu0
      %v1833 = vpop.f32.mrf.mxu0
      %v1834 = vadd.f32 %v1626, %v1833
      %v1835 = vpop.f32.mrf.mxu0
      %1836 = vdwg.mxu0
      %v1837 = vsub.f32 0.0, %v1711
      %v1838 = vsub.f32 0.0, %v1714
      %v1839 = vsub.f32 0.0, %v1719
      %v1840 = vsub.f32 0.0, %v1722
      %v1841 = vsub.f32 0.0, %v1727
      %v1842 = vsub.f32 0.0, %v1730
      %v1843 = vsub.f32 0.0, %v1735
      %v1844 = vsub.f32 0.0, %v1738
      %v1845 = vsub.f32 0.0, %v1743
      %v1846 = vsub.f32 0.0, %v1746
      %v1847 = vsub.f32 0.0, %v1751
      %v1848 = vsub.f32 0.0, %v1754
      %v1849 = vsub.f32 0.0, %v1759
      %v1850 = vsub.f32 0.0, %v1762
      %v1851 = vsub.f32 0.0, %v1767
      %v1852 = vsub.f32 0.0, %v1770
      %v1853 = vsub.f32 0.0, %v1775
      %v1854 = vsub.f32 0.0, %v1778
      %v1855 = vsub.f32 0.0, %v1783
      %v1856 = vsub.f32 0.0, %v1786
      %v1857 = vsub.f32 0.0, %v1791
      %v1858 = vsub.f32 0.0, %v1794
      %v1859 = vsub.f32 0.0, %v1799
      %v1860 = vsub.f32 0.0, %v1802
      %v1861 = vsub.f32 0.0, %v1807
      %v1862 = vsub.f32 0.0, %v1810
      %v1863 = vsub.f32 0.0, %v1815
      %v1864 = vsub.f32 0.0, %v1818
      %v1865 = vsub.f32 0.0, %v1823
      %v1866 = vsub.f32 0.0, %v1826
      %v1867 = vsub.f32 0.0, %v1831
      %v1868 = vsub.f32 0.0, %v1834
      %v1869 = vmul.f32 %v1837, 1.442695
      %v1870 = vpow.pop %v1869
      %v1871 = vmul.f32 %v1838, 1.442695
      %v1872 = vpow.pop %v1871
      %v1873 = vmul.f32 %v1839, 1.442695
      %v1874 = vpow.pop %v1873
      %v1875 = vmul.f32 %v1840, 1.442695
      %v1876 = vpow.pop %v1875
      %v1877 = vmul.f32 %v1841, 1.442695
      %v1878 = vpow.pop %v1877
      %v1879 = vmul.f32 %v1842, 1.442695
      %v1880 = vpow.pop %v1879
      %v1881 = vmul.f32 %v1843, 1.442695
      %v1882 = vpow.pop %v1881
      %v1883 = vmul.f32 %v1844, 1.442695
      %v1884 = vpow.pop %v1883
      %v1885 = vmul.f32 %v1845, 1.442695
      %v1886 = vpow.pop %v1885
      %v1887 = vmul.f32 %v1846, 1.442695
      %v1888 = vpow.pop %v1887
      %v1889 = vmul.f32 %v1847, 1.442695
      %v1890 = vpow.pop %v1889
      %v1891 = vmul.f32 %v1848, 1.442695
      %v1892 = vpow.pop %v1891
      %v1893 = vmul.f32 %v1849, 1.442695
      %v1894 = vpow.pop %v1893
      %v1895 = vmul.f32 %v1850, 1.442695
      %v1896 = vpow.pop %v1895
      %v1897 = vmul.f32 %v1851, 1.442695
      %v1898 = vpow.pop %v1897
      %v1899 = vmul.f32 %v1852, 1.442695
      %v1900 = vpow.pop %v1899
      %v1901 = vmul.f32 %v1853, 1.442695
      %v1902 = vpow.pop %v1901
      %v1903 = vmul.f32 %v1854, 1.442695
      %v1904 = vpow.pop %v1903
      %v1905 = vmul.f32 %v1855, 1.442695
      %v1906 = vpow.pop %v1905
      %v1907 = vmul.f32 %v1856, 1.442695
      %v1908 = vpow.pop %v1907
      %v1909 = vmul.f32 %v1857, 1.442695
      %v1910 = vpow.pop %v1909
      %v1911 = vmul.f32 %v1858, 1.442695
      %v1912 = vpow.pop %v1911
      %v1913 = vmul.f32 %v1859, 1.442695
      %v1914 = vpow.pop %v1913
      %v1915 = vmul.f32 %v1860, 1.442695
      %v1916 = vpow.pop %v1915
      %v1917 = vmul.f32 %v1861, 1.442695
      %v1918 = vpow.pop %v1917
      %v1919 = vmul.f32 %v1862, 1.442695
      %v1920 = vpow.pop %v1919
      %v1921 = vmul.f32 %v1863, 1.442695
      %v1922 = vpow.pop %v1921
      %v1923 = vmul.f32 %v1864, 1.442695
      %v1924 = vpow.pop %v1923
      %v1925 = vmul.f32 %v1865, 1.442695
      %v1926 = vpow.pop %v1925
      %v1927 = vmul.f32 %v1866, 1.442695
      %v1928 = vpow.pop %v1927
      %v1929 = vmul.f32 %v1867, 1.442695
      %v1930 = vpow.pop %v1929
      %v1931 = vmul.f32 %v1868, 1.442695
      %v1932 = vpow.pop %v1931
      %v1933 = vadd.f32 %v1870, 1.0
      %v1934 = vadd.f32 %v1872, 1.0
      %v1935 = vadd.f32 %v1874, 1.0
      %v1936 = vadd.f32 %v1876, 1.0
      %v1937 = vadd.f32 %v1878, 1.0
      %v1938 = vadd.f32 %v1880, 1.0
      %v1939 = vadd.f32 %v1882, 1.0
      %v1940 = vadd.f32 %v1884, 1.0
      %v1941 = vadd.f32 %v1886, 1.0
      %v1942 = vadd.f32 %v1888, 1.0
      %v1943 = vadd.f32 %v1890, 1.0
      %v1944 = vadd.f32 %v1892, 1.0
      %v1945 = vadd.f32 %v1894, 1.0
      %v1946 = vadd.f32 %v1896, 1.0
      %v1947 = vadd.f32 %v1898, 1.0
      %v1948 = vadd.f32 %v1900, 1.0
      %v1949 = vadd.f32 %v1902, 1.0
      %v1950 = vadd.f32 %v1904, 1.0
      %v1951 = vadd.f32 %v1906, 1.0
      %v1952 = vadd.f32 %v1908, 1.0
      %v1953 = vadd.f32 %v1910, 1.0
      %v1954 = vadd.f32 %v1912, 1.0
      %v1955 = vadd.f32 %v1914, 1.0
      %v1956 = vadd.f32 %v1916, 1.0
      %v1957 = vadd.f32 %v1918, 1.0
      %v1958 = vadd.f32 %v1920, 1.0
      %v1959 = vadd.f32 %v1922, 1.0
      %v1960 = vadd.f32 %v1924, 1.0
      %v1961 = vadd.f32 %v1926, 1.0
      %v1962 = vadd.f32 %v1928, 1.0
      %v1963 = vadd.f32 %v1930, 1.0
      %v1964 = vadd.f32 %v1932, 1.0
      %v1965 = vrcp.pop %v1933
      %v1966 = vrcp.pop %v1934
      %v1967 = vrcp.pop %v1935
      %v1968 = vrcp.pop %v1936
      %v1969 = vrcp.pop %v1937
      %v1970 = vrcp.pop %v1938
      %v1971 = vrcp.pop %v1939
      %v1972 = vrcp.pop %v1940
      %v1973 = vrcp.pop %v1941
      %v1974 = vrcp.pop %v1942
      %v1975 = vrcp.pop %v1943
      %v1976 = vrcp.pop %v1944
      %v1977 = vrcp.pop %v1945
      %v1978 = vrcp.pop %v1946
      %v1979 = vrcp.pop %v1947
      %v1980 = vrcp.pop %v1948
      %v1981 = vrcp.pop %v1949
      %v1982 = vrcp.pop %v1950
      %v1983 = vrcp.pop %v1951
      %v1984 = vrcp.pop %v1952
      %v1985 = vrcp.pop %v1953
      %v1986 = vrcp.pop %v1954
      %v1987 = vrcp.pop %v1955
      %v1988 = vrcp.pop %v1956
      %v1989 = vrcp.pop %v1957
      %v1990 = vrcp.pop %v1958
      %v1991 = vrcp.pop %v1959
      %v1992 = vrcp.pop %v1960
      %v1993 = vrcp.pop %v1961
      %v1994 = vrcp.pop %v1962
      %v1995 = vrcp.pop %v1963
      %v1996 = vrcp.pop %v1964
      %vm1997 = vcmask 23552
      %1998 = vst.msk [vmem:[%s334] sm:$0xff] %vm1997, %v1965
      %1999 = vst.msk [vmem:[%s334 + $0x8] sm:$0xff] %vm1997, %v1966
      %2000 = vst.msk [vmem:[%s334 + $0x10] sm:$0xff] %vm1997, %v1967
      %2001 = vst.msk [vmem:[%s334 + $0x18] sm:$0xff] %vm1997, %v1968
      %2002 = vst.msk [vmem:[%s334 + $0x20] sm:$0xff] %vm1997, %v1969
      %2003 = vst.msk [vmem:[%s334 + $0x28] sm:$0xff] %vm1997, %v1970
      %2004 = vst.msk [vmem:[%s334 + $0x30] sm:$0xff] %vm1997, %v1971
      %2005 = vst.msk [vmem:[%s334 + $0x38] sm:$0xff] %vm1997, %v1972
      %2006 = vst.msk [vmem:[%s334 + $0x40] sm:$0xff] %vm1997, %v1973
      %2007 = vst.msk [vmem:[%s334 + $0x48] sm:$0xff] %vm1997, %v1974
      %2008 = vst.msk [vmem:[%s334 + $0x50] sm:$0xff] %vm1997, %v1975
      %2009 = vst.msk [vmem:[%s334 + $0x58] sm:$0xff] %vm1997, %v1976
      %2010 = vst.msk [vmem:[%s334 + $0x60] sm:$0xff] %vm1997, %v1977
      %2011 = vst.msk [vmem:[%s334 + $0x68] sm:$0xff] %vm1997, %v1978
      %2012 = vst.msk [vmem:[%s334 + $0x70] sm:$0xff] %vm1997, %v1979
      %2013 = vst.msk [vmem:[%s334 + $0x78] sm:$0xff] %vm1997, %v1980
      %2014 = vst.msk [vmem:[%s334 + $0x80] sm:$0xff] %vm1997, %v1981
      %2015 = vst.msk [vmem:[%s334 + $0x88] sm:$0xff] %vm1997, %v1982
      %2016 = vst.msk [vmem:[%s334 + $0x90] sm:$0xff] %vm1997, %v1983
      %2017 = vst.msk [vmem:[%s334 + $0x98] sm:$0xff] %vm1997, %v1984
      %2018 = vst.msk [vmem:[%s334 + $0xa0] sm:$0xff] %vm1997, %v1985
      %2019 = vst.msk [vmem:[%s334 + $0xa8] sm:$0xff] %vm1997, %v1986
      %2020 = vst.msk [vmem:[%s334 + $0xb0] sm:$0xff] %vm1997, %v1987
      %2021 = vst.msk [vmem:[%s334 + $0xb8] sm:$0xff] %vm1997, %v1988
      %2022 = vst.msk [vmem:[%s334 + $0xc0] sm:$0xff] %vm1997, %v1989
      %2023 = vst.msk [vmem:[%s334 + $0xc8] sm:$0xff] %vm1997, %v1990
      %2024 = vst.msk [vmem:[%s334 + $0xd0] sm:$0xff] %vm1997, %v1991
      %2025 = vst.msk [vmem:[%s334 + $0xd8] sm:$0xff] %vm1997, %v1992
      %2026 = vst.msk [vmem:[%s334 + $0xe0] sm:$0xff] %vm1997, %v1993
      %2027 = vst.msk [vmem:[%s334 + $0xe8] sm:$0xff] %vm1997, %v1994
      %2028 = vst.msk [vmem:[%s334 + $0xf0] sm:$0xff] %vm1997, %v1995
      %2029 = vst.msk [vmem:[%s334 + $0xf8] sm:$0xff] %vm1997, %v1996
      %s2030 = smul.u32 32, %s20
      %p2031 = scmp.lt.s32.totalorder %s2030, 127
      %s2032 = scalar_select %p2031, %s2030, 127
      %s2033 = smul.addr %s2032, 8
      %s2034 = scalar_lea.vmem %s9, %s2033
      // Predicated region
      $region57: #{tpu_custom_call.1} parent=55 // pred_check
        %p2035 = pneg %p232
      $region58: #{tpu_custom_call.1} parent=55 // pred_check_branch
        %2037 = sbr.rel (%p2035) target = $region60
      $region59: #{tpu_custom_call.1} parent=55 // pred_region
        %s2038 = smul.u32 32, %s20
      $region60: #{tpu_custom_call.1} parent=55 // pred_fallthru
        _
    $region56: #{tpu_custom_call.1} parent=5 // pred_fallthru
      _
    %p2039 = scmp.le.s32.totalorder 2, %s15
    // Predicated region
    $region61: #{tpu_custom_call.1} parent=5 // pred_check
      %p2040 = pneg %p2039
    $region62: #{tpu_custom_call.1} parent=5 // pred_check_branch
      %2042 = sbr.rel (%p2040) target = $region64
    $region63: #{tpu_custom_call.1} parent=5 // pred_region
      %s2043 = ssub.s32 %s15, 2
      // Predicated region
      $region65: #{tpu_custom_call.1} parent=63 // pred_check
        %p2044 = pneg %p238
      $region66: #{tpu_custom_call.1} parent=63 // pred_check_branch
        %2046 = sbr.rel (%p2044) target = $region68
      $region67: #{tpu_custom_call.1} parent=63 // pred_region
        %s2047 = smul.u32 32, %s21
        %p2048 = scmp.lt.s32.totalorder %s2047, 127
        %s2049 = scalar_select %p2048, %s2047, 127
        %s2050 = smul.addr %s2049, 8
        %s2051 = scalar_lea.vmem %s9, %s2050
      $region68: #{tpu_custom_call.1} parent=63 // pred_fallthru
        _
    $region64: #{tpu_custom_call.1} parent=5 // pred_fallthru
      _
  $region6: #{tpu_custom_call.1} parent=0 // loop_footer
    %s19 = sadd.s32 1, %s15
  $region7: #{tpu_custom_call.1} parent=0 // loop_footer_branch
    %14 = sbr.rel target = $region3
  $region8: #{tpu_custom_call.1} parent=0 // loop_exit
    _

</llo_original>
